<compile_context>
chip_gen: v5e
topology: v5e:2x2
jax: 0.10.0
libtpu: 0.0.40
codegen_flags: <defaults>
</compile_context>

<pallas_src>
import jax
import jax.numpy as jnp
from jax.experimental import pallas as pl
from jax.experimental.pallas import tpu as pltpu

IN_DIM = 6400
HIDDEN = 200
NUM_ACTIONS = 2


def _policy_kernel(x_ref, w1_ref, b1_ref, w2_ref, b2_ref, out_ref, acc_ref):
    # Grid axis 0 walks tiles of the 6400-wide input feature dimension
    # (reduction axis), accumulating the hidden pre-activation in VMEM scratch.
    k = pl.program_id(0)

    @pl.when(k == 0)
    def _():
        # Seed the accumulator with the broadcast bias (saves an add later).
        acc_ref[...] = jnp.broadcast_to(b1_ref[...], acc_ref.shape)

    # Partial matmul for this K-tile: (B, tk)bf16 @ (tk, HIDDEN)bf16 -> f32 acc.
    acc_ref[...] += jnp.dot(
        x_ref[...], w1_ref[...], preferred_element_type=jnp.float32
    )

    @pl.when(k == pl.num_programs(0) - 1)
    def _():
        # Finalize: ReLU, second affine, numerically stable softmax.
        h = jnp.maximum(acc_ref[...], 0.0)
        logits = (
            jnp.dot(h, w2_ref[...], preferred_element_type=jnp.float32)
            + b2_ref[...]
        )
        m = jnp.max(logits, axis=1, keepdims=True)
        e = jnp.exp(logits - m)
        denom = jnp.sum(e, axis=1, keepdims=True)
        out_ref[...] = (e * pl.reciprocal(denom, approx=False)).astype(
            out_ref.dtype
        )


def policy_forward(x, w1t, b1, w2t, b2, *, tk=3200):
    """x: (B, 6400) f32; w1t: (6400, 200); b1: (1, 200); w2t: (200, 2); b2: (1, 2).

    x / W1^T are streamed in bf16 (cast here, in the wrapper); everything is
    accumulated in f32 on the MXU. tk must be a multiple of 128 that divides
    6400 (valid: 128, 256, 640, 1280, 3200, 6400).
    """
    B, K = x.shape
    assert K == IN_DIM
    assert K % tk == 0 and tk % 128 == 0, "tk must divide 6400 and be a multiple of 128"
    grid = (K // tk,)

    # Halve the dominant HBM stream (W1) and the x stream; f32 accumulation on MXU.
    x_bf = x.astype(jnp.bfloat16)
    w1_bf = w1t.astype(jnp.bfloat16)

    cost = pl.CostEstimate(
        flops=2 * B * IN_DIM * HIDDEN + 2 * B * HIDDEN * NUM_ACTIONS,
        transcendentals=B * NUM_ACTIONS,
        bytes_accessed=(
            x_bf.size * 2          # x (bf16)
            + w1_bf.size * 2       # W1^T (bf16) -- dominant stream
            + b1.size * 4 + w2t.size * 4 + b2.size * 4
            + B * NUM_ACTIONS * 4  # output
        ),
    )

    return pl.pallas_call(
        _policy_kernel,
        out_shape=jax.ShapeDtypeStruct((B, NUM_ACTIONS), jnp.float32),
        grid_spec=pltpu.PrefetchScalarGridSpec(
            num_scalar_prefetch=0,
            grid=grid,
            in_specs=[
                pl.BlockSpec((B, tk), lambda k: (0, k)),                # x tile (bf16)
                pl.BlockSpec((tk, HIDDEN), lambda k: (k, 0)),           # W1^T tile (bf16)
                pl.BlockSpec((1, HIDDEN), lambda k: (0, 0)),            # b1 (resident)
                pl.BlockSpec((HIDDEN, NUM_ACTIONS), lambda k: (0, 0)),  # W2^T (resident)
                pl.BlockSpec((1, NUM_ACTIONS), lambda k: (0, 0)),       # b2 (resident)
            ],
            out_specs=pl.BlockSpec((B, NUM_ACTIONS), lambda k: (0, 0)),
            scratch_shapes=[pltpu.VMEM((B, HIDDEN), jnp.float32)],
        ),
        compiler_params=pltpu.CompilerParams(
            dimension_semantics=("arbitrary",),  # reduction over K tiles
        ),
        cost_estimate=cost,
    )(x_bf, w1_bf, b1, w2t, b2)


def _reference_bf16(x, w1t, b1, w2t, b2):
    # Reference that mirrors the kernel's precision: inputs of the first matmul
    # rounded to bf16, all accumulation in f32.
    xf = x.astype(jnp.bfloat16).astype(jnp.float32)
    wf = w1t.astype(jnp.bfloat16).astype(jnp.float32)
    h = jnp.maximum(
        jax.lax.dot(xf, wf, precision=jax.lax.Precision.HIGHEST) + b1, 0.0
    )
    logits = jax.lax.dot(h, w2t, precision=jax.lax.Precision.HIGHEST) + b2
    return jax.nn.softmax(logits, axis=1)


def _reference_f32(x, w1t, b1, w2t, b2):
    h = jnp.maximum(x @ w1t + b1, 0.0)
    logits = h @ w2t + b2
    return jax.nn.softmax(logits, axis=1)


if __name__ == "__main__":
    key = jax.random.PRNGKey(0)
    k_x, k_w1, k_b1, k_w2, k_b2 = jax.random.split(key, 5)

    B = 8  # small batch (sublane-aligned)

    # Deterministic param init mirroring nn.Linear default U(-1/sqrt(fan_in), ...)
    bound1 = 1.0 / jnp.sqrt(jnp.float32(IN_DIM))
    bound2 = 1.0 / jnp.sqrt(jnp.float32(HIDDEN))
    w1t = jax.random.uniform(k_w1, (IN_DIM, HIDDEN), jnp.float32, -bound1, bound1)
    b1 = jax.random.uniform(k_b1, (1, HIDDEN), jnp.float32, -bound1, bound1)
    w2t = jax.random.uniform(k_w2, (HIDDEN, NUM_ACTIONS), jnp.float32, -bound2, bound2)
    b2 = jax.random.uniform(k_b2, (1, NUM_ACTIONS), jnp.float32, -bound2, bound2)

    x = jax.random.normal(k_x, (B, IN_DIM), jnp.float32)

    probs = policy_forward(x, w1t, b1, w2t, b2)
    probs = jax.block_until_ready(probs)

    ref_bf16 = _reference_bf16(x, w1t, b1, w2t, b2)
    ref_f32 = _reference_f32(x, w1t, b1, w2t, b2)

    assert probs.shape == (B, NUM_ACTIONS)
    # Tight check against a precision-matched (bf16-input) reference.
    assert jnp.allclose(probs, ref_bf16, atol=2e-3, rtol=2e-3)
    # Loose check against the full-f32 reference (semantics sanity).
    assert jnp.allclose(probs, ref_f32, atol=2e-2, rtol=2e-2)
    assert jnp.allclose(jnp.sum(probs, axis=1), 1.0, atol=1e-5)

    print("KERNEL_OK")
</pallas_src>

<mosaic_0001>
module attributes {stable_mosaic.version = 11 : i64} {
  func.func @_policy_kernel(%arg0: i32, %arg1: memref<8x3200xbf16, #tpu.memory_space<vmem>>, %arg2: memref<3200x200xbf16, #tpu.memory_space<vmem>>, %arg3: memref<1x200xf32, #tpu.memory_space<vmem>>, %arg4: memref<200x2xf32, #tpu.memory_space<vmem>>, %arg5: memref<1x2xf32, #tpu.memory_space<vmem>>, %arg6: memref<8x2xf32, #tpu.memory_space<vmem>>, %arg7: memref<8x200xf32, #tpu.memory_space<vmem>>) attributes {dimension_semantics = [#tpu.dimension_semantics<arbitrary>], iteration_bounds = array<i64: 2>, scalar_prefetch = 0 : i64, scratch_operands = 1 : i64, tpu.core_type = #tpu.core_type<tc>, window_params = [{transform_indices = @transform_0, window_bounds = array<i64: 8, 3200>}, {transform_indices = @transform_1, window_bounds = array<i64: 3200, 200>}, {pipeline_mode = #tpu.pipeline_mode<synchronous>, transform_indices = @transform_2, window_bounds = array<i64: 1, 200>}, {pipeline_mode = #tpu.pipeline_mode<synchronous>, transform_indices = @transform_3, window_bounds = array<i64: 200, 2>}, {pipeline_mode = #tpu.pipeline_mode<synchronous>, transform_indices = @transform_4, window_bounds = array<i64: 1, 2>}, {pipeline_mode = #tpu.pipeline_mode<synchronous>, transform_indices = @transform_5, window_bounds = array<i64: 8, 2>}]} {
    %c0_i32 = arith.constant 0 : i32
    %0 = arith.cmpi eq, %arg0, %c0_i32 : i32
    %1 = arith.extui %0 : i1 to i32
    %c0_i32_0 = arith.constant 0 : i32
    %2 = arith.cmpi ne, %1, %c0_i32_0 : i32
    scf.if %2 {
      %c0_9 = arith.constant 0 : index
      %c0_10 = arith.constant 0 : index
      %12 = vector.load %arg3[%c0_9, %c0_10] : memref<1x200xf32, #tpu.memory_space<vmem>>, vector<1x200xf32>
      %13 = vector.shape_cast %12 : vector<1x200xf32> to vector<1x200xf32>
      %14 = vector.broadcast %13 : vector<1x200xf32> to vector<8x200xf32>
      %c0_11 = arith.constant 0 : index
      %c0_12 = arith.constant 0 : index
      %15 = vector.load %arg7[%c0_11, %c0_12] : memref<8x200xf32, #tpu.memory_space<vmem>>, vector<8x200xf32>
      tpu.vector_store %arg7[%c0_11, %c0_12], %14 {strides = array<i32>} : memref<8x200xf32, #tpu.memory_space<vmem>>, vector<8x200xf32>,
    } else {
    }
    %c0 = arith.constant 0 : index
    %c0_1 = arith.constant 0 : index
    %3 = vector.load %arg7[%c0, %c0_1] : memref<8x200xf32, #tpu.memory_space<vmem>>, vector<8x200xf32>
    %c0_2 = arith.constant 0 : index
    %c0_3 = arith.constant 0 : index
    %4 = vector.load %arg1[%c0_2, %c0_3] : memref<8x3200xbf16, #tpu.memory_space<vmem>>, vector<8x3200xbf16>
    %c0_4 = arith.constant 0 : index
    %c0_5 = arith.constant 0 : index
    %5 = vector.load %arg2[%c0_4, %c0_5] : memref<3200x200xbf16, #tpu.memory_space<vmem>>, vector<3200x200xbf16>
    %cst = arith.constant dense<0.000000e+00> : vector<8x200xf32>
    %6 = tpu.matmul %4, %5, %cst {dimension_numbers = #tpu.dot_dimension_numbers<[1], [0], [0], [1], [0, 0, 1, 1], [], []>} : vector<8x3200xbf16>, vector<3200x200xbf16>, vector<8x200xf32> -> vector<8x200xf32>
    %7 = arith.addf %3, %6 : vector<8x200xf32>
    %c0_6 = arith.constant 0 : index
    %c0_7 = arith.constant 0 : index
    %8 = vector.load %arg7[%c0_6, %c0_7] : memref<8x200xf32, #tpu.memory_space<vmem>>, vector<8x200xf32>
    tpu.vector_store %arg7[%c0_6, %c0_7], %7 {strides = array<i32>} : memref<8x200xf32, #tpu.memory_space<vmem>>, vector<8x200xf32>,
    %c1_i32 = arith.constant 1 : i32
    %9 = arith.cmpi eq, %arg0, %c1_i32 : i32
    %10 = arith.extui %9 : i1 to i32
    %c0_i32_8 = arith.constant 0 : i32
    %11 = arith.cmpi ne, %10, %c0_i32_8 : i32
    scf.if %11 {
      %c0_9 = arith.constant 0 : index
      %c0_10 = arith.constant 0 : index
      %12 = vector.load %arg7[%c0_9, %c0_10] : memref<8x200xf32, #tpu.memory_space<vmem>>, vector<8x200xf32>
      %cst_11 = arith.constant 0.000000e+00 : f32
      %13 = vector.broadcast %cst_11 : f32 to vector<8x200xf32>
      %14 = arith.maximumf %12, %13 : vector<8x200xf32>
      %c0_12 = arith.constant 0 : index
      %c0_13 = arith.constant 0 : index
      %15 = vector.load %arg4[%c0_12, %c0_13] : memref<200x2xf32, #tpu.memory_space<vmem>>, vector<200x2xf32>
      %cst_14 = arith.constant dense<0.000000e+00> : vector<8x2xf32>
      %16 = tpu.matmul %14, %15, %cst_14 {dimension_numbers = #tpu.dot_dimension_numbers<[1], [0], [0], [1], [0, 0, 1, 1], [], []>} : vector<8x200xf32>, vector<200x2xf32>, vector<8x2xf32> -> vector<8x2xf32>
      %c0_15 = arith.constant 0 : index
      %c0_16 = arith.constant 0 : index
      %17 = vector.load %arg5[%c0_15, %c0_16] : memref<1x2xf32, #tpu.memory_space<vmem>>, vector<1x2xf32>
      %18 = vector.broadcast %17 : vector<1x2xf32> to vector<8x2xf32>
      %19 = arith.addf %16, %18 : vector<8x2xf32>
      %cst_17 = arith.constant dense<0xFF800000> : vector<8xf32>
      %20 = vector.multi_reduction <maximumf>, %19, %cst_17 [1] : vector<8x2xf32> to vector<8xf32>
      %21 = vector.shape_cast %20 : vector<8xf32> to vector<8x1xf32>
      %22 = vector.broadcast %21 : vector<8x1xf32> to vector<8x2xf32>
      %23 = arith.subf %19, %22 : vector<8x2xf32>
      %24 = math.exp %23 : vector<8x2xf32>
      %cst_18 = arith.constant dense<0.000000e+00> : vector<8xf32>
      %25 = vector.multi_reduction <add>, %24, %cst_18 [1] : vector<8x2xf32> to vector<8xf32>
      %26 = vector.shape_cast %25 : vector<8xf32> to vector<8x1xf32>
      %27 = tpu.reciprocal %26 : vector<8x1xf32> -> vector<8x1xf32>
      %28 = vector.broadcast %27 : vector<8x1xf32> to vector<8x2xf32>
      %29 = arith.mulf %24, %28 : vector<8x2xf32>
      %c0_19 = arith.constant 0 : index
      %c0_20 = arith.constant 0 : index
      %30 = vector.load %arg6[%c0_19, %c0_20] : memref<8x2xf32, #tpu.memory_space<vmem>>, vector<8x2xf32>
      tpu.vector_store %arg6[%c0_19, %c0_20], %29 {strides = array<i32>} : memref<8x2xf32, #tpu.memory_space<vmem>>, vector<8x2xf32>,
    } else {
    }
    return
  }
  func.func @transform_0(%arg0: i32) -> (i32, i32) {
    %c0_i32 = arith.constant 0 : i32
    %c0_i32_0 = arith.constant 0 : i32
    return %c0_i32, %arg0 : i32, i32
  }
  func.func @transform_1(%arg0: i32) -> (i32, i32) {
    %c0_i32 = arith.constant 0 : i32
    %c0_i32_0 = arith.constant 0 : i32
    return %arg0, %c0_i32 : i32, i32
  }
  func.func @transform_2(%arg0: i32) -> (i32, i32) {
    %c0_i32 = arith.constant 0 : i32
    %c0_i32_0 = arith.constant 0 : i32
    %c0_i32_1 = arith.constant 0 : i32
    return %c0_i32, %c0_i32_0 : i32, i32
  }
  func.func @transform_3(%arg0: i32) -> (i32, i32) {
    %c0_i32 = arith.constant 0 : i32
    %c0_i32_0 = arith.constant 0 : i32
    %c0_i32_1 = arith.constant 0 : i32
    return %c0_i32, %c0_i32_0 : i32, i32
  }
  func.func @transform_4(%arg0: i32) -> (i32, i32) {
    %c0_i32 = arith.constant 0 : i32
    %c0_i32_0 = arith.constant 0 : i32
    %c0_i32_1 = arith.constant 0 : i32
    return %c0_i32, %c0_i32_0 : i32, i32
  }
  func.func @transform_5(%arg0: i32) -> (i32, i32) {
    %c0_i32 = arith.constant 0 : i32
    %c0_i32_0 = arith.constant 0 : i32
    %c0_i32_1 = arith.constant 0 : i32
    return %c0_i32, %c0_i32_0 : i32, i32
  }
}

</mosaic_0001>

<llo_original>
// kernel: tpu_custom_call.1
$region0: #{tpu_custom_call.1}
  #allocation0 [shape = 'u32[]', space=smem, size = 0x4, offset = 0x4, fixed_abs, tag = 'smem constant byte address 0x4 - core index']
  #allocation1 [shape = 'u32[72,128]{1,0:T(1,128)}', space=vmem, size = 0x9000, scoped, tag = 'internal scratch']
  #allocation2 [shape = 'f32[8,200]{1,0:T(8,128)}', space=vmem, size = 0x2000, scoped, tag = 'scratch operand']
  %s0 = inlined_call_operand.vmem [shape: bf16[8,6400], index: 0, kind: input, shape index: {}]
  %s1 = inlined_call_operand.vmem [shape: bf16[6400,200], index: 1, kind: input, shape index: {}]
  %s2 = inlined_call_operand.vmem [shape: f32[1,200], index: 2, kind: input, shape index: {}]
  %s3 = inlined_call_operand.vmem [shape: f32[200,2], index: 3, kind: input, shape index: {}]
  %s4 = inlined_call_operand.vmem [shape: f32[1,2], index: 4, kind: input, shape index: {}]
  %s5 = inlined_call_operand.vmem [shape: f32[8,2], index: 5, kind: output, shape index: {}]
  %s6 = sld [smem:[#allocation0]]
  $region61: #{tpu_custom_call.1} parent=0
    _
  %s8 = ssub.s32 1, %s6
  %s9 = scalar_select 0, %s8, %s6
  loop: start=0, step=1, limit=4
  $region2: #{tpu_custom_call.1} parent=0 // loop_pre_header
    _
  $region3: #{tpu_custom_call.1} parent=0 // loop_header
    %s11 = sphi 0, %s15
    %p12 = scmp.ge.s32.totalorder %s11, 4
    %s21 = sphi 0, %s23
    %s24 = sphi 0, %s21
    %s25 = sphi 0, %s24
    %s41 = sphi 0, %s25
    %s47 = sphi 0, %s49
    %s50 = sphi 0, %s47
    %s51 = sphi 0, %s50
    %s67 = sphi 0, %s51
    %s71 = sphi 0, %s71
    %s73 = sphi 0, %s71
    %s74 = sphi 0, %s73
    %s88 = sphi 0, %s74
    %s92 = sphi 0, %s92
    %s94 = sphi 0, %s92
    %s95 = sphi 0, %s94
    %s109 = sphi 0, %s95
    %s113 = sphi 0, %s113
    %s115 = sphi 0, %s113
    %s116 = sphi 0, %s115
    %s130 = sphi 0, %s116
    %s134 = sphi 0, %s134
    %s136 = sphi 0, %s134
    %s137 = sphi 0, %s136
    %s151 = sphi 0, %s137
  $region4: #{tpu_custom_call.1} parent=0 // loop_header_branch
    %14 = sbr.rel (%p12) target = $region8
  $region5: #{tpu_custom_call.1} parent=0 // loop_body
    %s16 = ssub.s32 %s11, 1
    %s17 = ssub.s32 %s11, 2
    %s18 = sadd.s32 %s11, 1
    %s19 = ssub.s32 %s11, %s18
    %p20 = scmp.eq.s32.totalorder %s19, 0
    %s22 = sadd.s32 %s21, 1
    %s23 = scalar_select %p20, %s21, %s22
    %p26 = pneg %p20
    %p27 = scmp.eq.s32.totalorder %s11, 1
    %p28 = por %p26, %p27
    %p29 = scmp.ne.s32.totalorder %s21, %s24
    %p30 = scmp.eq.s32.totalorder %s11, 0
    %p31 = por %p29, %p30
    %p32 = scmp.ne.s32.totalorder %s21, %s24
    %p33 = scmp.eq.s32.totalorder %s16, 1
    %p34 = por %p32, %p33
    %p35 = scmp.ne.s32.totalorder %s24, %s25
    %p36 = scmp.eq.s32.totalorder %s16, 0
    %p37 = por %p35, %p36
    %p38 = scmp.ne.s32.totalorder %s24, %s25
    %p39 = scmp.eq.s32.totalorder %s17, 1
    %p40 = por %p38, %p39
    %p42 = scmp.ne.s32.totalorder %s25, %s41
    %p43 = scmp.eq.s32.totalorder %s17, 0
    %p44 = por %p42, %p43
    %s45 = ssub.s32 %s11, %s18
    %p46 = scmp.eq.s32.totalorder %s45, 0
    %s48 = sadd.s32 %s47, 1
    %s49 = scalar_select %p46, %s47, %s48
    %p52 = pneg %p46
    %p53 = scmp.eq.s32.totalorder %s11, 1
    %p54 = por %p52, %p53
    %p55 = scmp.ne.s32.totalorder %s47, %s50
    %p56 = scmp.eq.s32.totalorder %s11, 0
    %p57 = por %p55, %p56
    %p58 = scmp.ne.s32.totalorder %s47, %s50
    %p59 = scmp.eq.s32.totalorder %s16, 1
    %p60 = por %p58, %p59
    %p61 = scmp.ne.s32.totalorder %s50, %s51
    %p62 = scmp.eq.s32.totalorder %s16, 0
    %p63 = por %p61, %p62
    %p64 = scmp.ne.s32.totalorder %s50, %s51
    %p65 = scmp.eq.s32.totalorder %s17, 1
    %p66 = por %p64, %p65
    %p68 = scmp.ne.s32.totalorder %s51, %s67
    %p69 = scmp.eq.s32.totalorder %s17, 0
    %p70 = por %p68, %p69
    %s72 = sadd.s32 %s71, 1
    %p75 = scmp.eq.s32.totalorder %s11, 1
    %p76 = scmp.ne.s32.totalorder %s71, %s73
    %p77 = scmp.eq.s32.totalorder %s11, 0
    %p78 = por %p76, %p77
    %p79 = scmp.ne.s32.totalorder %s71, %s73
    %p80 = scmp.eq.s32.totalorder %s16, 1
    %p81 = por %p79, %p80
    %p82 = scmp.ne.s32.totalorder %s73, %s74
    %p83 = scmp.eq.s32.totalorder %s16, 0
    %p84 = por %p82, %p83
    %p85 = scmp.ne.s32.totalorder %s73, %s74
    %p86 = scmp.eq.s32.totalorder %s17, 1
    %p87 = por %p85, %p86
    %p89 = scmp.ne.s32.totalorder %s74, %s88
    %p90 = scmp.eq.s32.totalorder %s17, 0
    %p91 = por %p89, %p90
    %s93 = sadd.s32 %s92, 1
    %p96 = scmp.eq.s32.totalorder %s11, 1
    %p97 = scmp.ne.s32.totalorder %s92, %s94
    %p98 = scmp.eq.s32.totalorder %s11, 0
    %p99 = por %p97, %p98
    %p100 = scmp.ne.s32.totalorder %s92, %s94
    %p101 = scmp.eq.s32.totalorder %s16, 1
    %p102 = por %p100, %p101
    %p103 = scmp.ne.s32.totalorder %s94, %s95
    %p104 = scmp.eq.s32.totalorder %s16, 0
    %p105 = por %p103, %p104
    %p106 = scmp.ne.s32.totalorder %s94, %s95
    %p107 = scmp.eq.s32.totalorder %s17, 1
    %p108 = por %p106, %p107
    %p110 = scmp.ne.s32.totalorder %s95, %s109
    %p111 = scmp.eq.s32.totalorder %s17, 0
    %p112 = por %p110, %p111
    %s114 = sadd.s32 %s113, 1
    %p117 = scmp.eq.s32.totalorder %s11, 1
    %p118 = scmp.ne.s32.totalorder %s113, %s115
    %p119 = scmp.eq.s32.totalorder %s11, 0
    %p120 = por %p118, %p119
    %p121 = scmp.ne.s32.totalorder %s113, %s115
    %p122 = scmp.eq.s32.totalorder %s16, 1
    %p123 = por %p121, %p122
    %p124 = scmp.ne.s32.totalorder %s115, %s116
    %p125 = scmp.eq.s32.totalorder %s16, 0
    %p126 = por %p124, %p125
    %p127 = scmp.ne.s32.totalorder %s115, %s116
    %p128 = scmp.eq.s32.totalorder %s17, 1
    %p129 = por %p127, %p128
    %p131 = scmp.ne.s32.totalorder %s116, %s130
    %p132 = scmp.eq.s32.totalorder %s17, 0
    %p133 = por %p131, %p132
    %s135 = sadd.s32 %s134, 1
    %p138 = scmp.eq.s32.totalorder %s11, 1
    %p139 = scmp.ne.s32.totalorder %s134, %s136
    %p140 = scmp.eq.s32.totalorder %s11, 0
    %p141 = por %p139, %p140
    %p142 = scmp.ne.s32.totalorder %s134, %s136
    %p143 = scmp.eq.s32.totalorder %s16, 1
    %p144 = por %p142, %p143
    %p145 = scmp.ne.s32.totalorder %s136, %s137
    %p146 = scmp.eq.s32.totalorder %s16, 0
    %p147 = por %p145, %p146
    %p148 = scmp.ne.s32.totalorder %s136, %s137
    %p149 = scmp.eq.s32.totalorder %s17, 1
    %p150 = por %p148, %p149
    %p152 = scmp.ne.s32.totalorder %s137, %s151
    %p153 = scmp.eq.s32.totalorder %s17, 0
    %p154 = por %p152, %p153
    %p155 = scmp.le.s32.totalorder 1, %s11
    %p156 = scmp.lt.s32.totalorder %s11, 3
    %p157 = pnand %p155, %p156
    %p158 = pneg %p157
    // Predicated region
    $region9: #{tpu_custom_call.1} parent=5 // pred_check
      _
    $region10: #{tpu_custom_call.1} parent=5 // pred_check_branch
      %160 = sbr.rel (%p157) target = $region12
    $region11: #{tpu_custom_call.1} parent=5 // pred_region
      %s161 = ssub.s32 %s11, 1
      // Predicated region
      $region13: #{tpu_custom_call.1} parent=11 // pred_check
        %p162 = pneg %p84
      $region14: #{tpu_custom_call.1} parent=11 // pred_check_branch
        %164 = sbr.rel (%p162) target = $region16
      $region15: #{tpu_custom_call.1} parent=11 // pred_region
        _
      $region16: #{tpu_custom_call.1} parent=11 // pred_fallthru
        _
      // Predicated region
      $region17: #{tpu_custom_call.1} parent=11 // pred_check
        %p165 = pneg %p105
      $region18: #{tpu_custom_call.1} parent=11 // pred_check_branch
        %167 = sbr.rel (%p165) target = $region20
      $region19: #{tpu_custom_call.1} parent=11 // pred_region
        _
      $region20: #{tpu_custom_call.1} parent=11 // pred_fallthru
        _
      // Predicated region
      $region21: #{tpu_custom_call.1} parent=11 // pred_check
        %p168 = pneg %p126
      $region22: #{tpu_custom_call.1} parent=11 // pred_check_branch
        %170 = sbr.rel (%p168) target = $region24
      $region23: #{tpu_custom_call.1} parent=11 // pred_region
        _
      $region24: #{tpu_custom_call.1} parent=11 // pred_fallthru
        _
    $region12: #{tpu_custom_call.1} parent=5 // pred_fallthru
      _
    %p171 = scmp.lt.s32.totalorder %s11, 2
    // Predicated region
    $region25: #{tpu_custom_call.1} parent=5 // pred_check
      %p172 = pneg %p171
    $region26: #{tpu_custom_call.1} parent=5 // pred_check_branch
      %174 = sbr.rel (%p172) target = $region28
    $region27: #{tpu_custom_call.1} parent=5 // pred_region
      // Predicated region
      $region29: #{tpu_custom_call.1} parent=27 // pred_check
        %p175 = pneg %p31
      $region30: #{tpu_custom_call.1} parent=27 // pred_check_branch
        %177 = sbr.rel (%p175) target = $region32
      $region31: #{tpu_custom_call.1} parent=27 // pred_region
        %s178 = smul.u32 25, %s11
        %p179 = scmp.lt.s32.totalorder %s178, 49
        %s180 = scalar_select %p179, %s178, 49
        %s181 = smul.addr %s180, 4
        %s182 = scalar_lea.vmem %s0, %s181
        %s183 = smul.u32 25, %s11
      $region32: #{tpu_custom_call.1} parent=27 // pred_fallthru
        _
      // Predicated region
      $region33: #{tpu_custom_call.1} parent=27 // pred_check
        %p184 = pneg %p57
      $region34: #{tpu_custom_call.1} parent=27 // pred_check_branch
        %186 = sbr.rel (%p184) target = $region36
      $region35: #{tpu_custom_call.1} parent=27 // pred_region
        %s187 = smul.u32 400, %s11
        %p188 = scmp.lt.s32.totalorder %s187, 799
        %s189 = scalar_select %p188, %s187, 799
        %s190 = smul.addr %s189, 2
        %s191 = smul.addr %s190, 4
        %s192 = scalar_lea.vmem %s1, %s191
        %s193 = smul.u32 400, %s11
      $region36: #{tpu_custom_call.1} parent=27 // pred_fallthru
        _
    $region28: #{tpu_custom_call.1} parent=5 // pred_fallthru
      _
    %p194 = scmp.le.s32.totalorder 1, %s11
    %p195 = scmp.lt.s32.totalorder %s11, 3
    %p196 = pnand %p194, %p195
    %p197 = pneg %p196
    // Predicated region
    $region37: #{tpu_custom_call.1} parent=5 // pred_check
      _
    $region38: #{tpu_custom_call.1} parent=5 // pred_check_branch
      %199 = sbr.rel (%p196) target = $region40
    $region39: #{tpu_custom_call.1} parent=5 // pred_region
      %s200 = ssub.s32 %s11, 1
      %s201 = smul.u32 25, %s16
      %p202 = scmp.lt.s32.totalorder %s201, 49
      %s203 = scalar_select %p202, %s201, 49
      %s204 = smul.addr %s203, 4
      %s205 = scalar_lea.vmem %s0, %s204
      %p206 = pneg %p37
      %p207 = pneg %p34
      %s208 = smul.u32 400, %s16
      %p209 = scmp.lt.s32.totalorder %s208, 799
      %s210 = scalar_select %p209, %s208, 799
      %s211 = smul.addr %s210, 2
      %s212 = smul.addr %s211, 4
      %s213 = scalar_lea.vmem %s1, %s212
      %p214 = pneg %p63
      %p215 = pneg %p60
      %p216 = pneg %p84
      %p217 = pneg %p81
      %p218 = pneg %p105
      %p219 = pneg %p102
      %p220 = pneg %p126
      %p221 = pneg %p123
      %p222 = pneg %p147
      %p223 = pneg %p144
      %s224 = smul.u32 25, %s16
      %p225 = scmp.lt.s32.totalorder %s224, 49
      %s226 = scalar_select %p225, %s224, 49
      %s227 = smul.addr %s226, 4
      %s228 = scalar_lea.vmem %s0, %s227
      %s229 = smul.u32 25, %s16
      %s230 = smul.u32 400, %s16
      %p231 = scmp.lt.s32.totalorder %s230, 799
      %s232 = scalar_select %p231, %s230, 799
      %s233 = smul.addr %s232, 2
      %s234 = smul.addr %s233, 4
      %s235 = scalar_lea.vmem %s1, %s234
      %s236 = smul.u32 400, %s16
      %p237 = scmp.eq.s32.totalorder %s16, 0
      // Predicated region
      $region41: #{tpu_custom_call.1} parent=39 // pred_check
        %p238 = pneg %p237
      $region42: #{tpu_custom_call.1} parent=39 // pred_check_branch
        %240 = sbr.rel (%p238) target = $region44
      $region43: #{tpu_custom_call.1} parent=39 // pred_region
        %v241 = vld [vmem:[%s2] sm:$0x3]
        %v243 = vperm.slane %v241, 0
        %v244 = vperm.slane %v241, 1
        %247 = vst [vmem:[#allocation2] sm:$0xff] %v243
        %vm248 = vcmask 588800
        %249 = vst.msk [vmem:[#allocation2 + $0x8] sm:$0xff] %vm248, %v244
      $region44: #{tpu_custom_call.1} parent=39 // pred_fallthru
        _
      %v250 = vld [vmem:[#allocation2] sm:$0xff]
      %v251 = vld [vmem:[#allocation2 + $0x8] sm:$0xff]
      %v252 = vld [vmem:[%s228] sm:$0xff]
      %v253 = vld [vmem:[%s228 + $0x8] sm:$0xff]
      %v254 = vld [vmem:[%s228 + $0x10] sm:$0xff]
      %v255 = vld [vmem:[%s228 + $0x18] sm:$0xff]
      %v256 = vld [vmem:[%s228 + $0x20] sm:$0xff]
      %v257 = vld [vmem:[%s228 + $0x28] sm:$0xff]
      %v258 = vld [vmem:[%s228 + $0x30] sm:$0xff]
      %v259 = vld [vmem:[%s228 + $0x38] sm:$0xff]
      %v260 = vld [vmem:[%s228 + $0x40] sm:$0xff]
      %v261 = vld [vmem:[%s228 + $0x48] sm:$0xff]
      %v262 = vld [vmem:[%s228 + $0x50] sm:$0xff]
      %v263 = vld [vmem:[%s228 + $0x58] sm:$0xff]
      %v264 = vld [vmem:[%s228 + $0x60] sm:$0xf]
      %v265 = vld [vmem:[%s235] sm:$0xff]
      %v266 = vld [vmem:[%s235 + $0x8] sm:$0xff]
      %v267 = vld [vmem:[%s235 + $0x10] sm:$0xff]
      %v268 = vld [vmem:[%s235 + $0x18] sm:$0xff]
      %v269 = vld [vmem:[%s235 + $0x20] sm:$0xff]
      %v270 = vld [vmem:[%s235 + $0x28] sm:$0xff]
      %v271 = vld [vmem:[%s235 + $0x30] sm:$0xff]
      %v272 = vld [vmem:[%s235 + $0x38] sm:$0xff]
      %v273 = vld [vmem:[%s235 + $0x40] sm:$0xff]
      %v274 = vld [vmem:[%s235 + $0x48] sm:$0xff]
      %v275 = vld [vmem:[%s235 + $0x50] sm:$0xff]
      %v276 = vld [vmem:[%s235 + $0x58] sm:$0xff]
      %v277 = vld [vmem:[%s235 + $0x60] sm:$0xff]
      %v278 = vld [vmem:[%s235 + $0x68] sm:$0xff]
      %v279 = vld [vmem:[%s235 + $0x70] sm:$0xff]
      %v280 = vld [vmem:[%s235 + $0x78] sm:$0xff]
      %v281 = vld [vmem:[%s235 + $0x80] sm:$0xff]
      %v282 = vld [vmem:[%s235 + $0x88] sm:$0xff]
      %v283 = vld [vmem:[%s235 + $0x90] sm:$0xff]
      %v284 = vld [vmem:[%s235 + $0x98] sm:$0xff]
      %v285 = vld [vmem:[%s235 + $0xa0] sm:$0xff]
      %v286 = vld [vmem:[%s235 + $0xa8] sm:$0xff]
      %v287 = vld [vmem:[%s235 + $0xb0] sm:$0xff]
      %v288 = vld [vmem:[%s235 + $0xb8] sm:$0xff]
      %v289 = vld [vmem:[%s235 + $0xc0] sm:$0xff]
      %v290 = vld [vmem:[%s235 + $0xc8] sm:$0xff]
      %v291 = vld [vmem:[%s235 + $0xd0] sm:$0xff]
      %v292 = vld [vmem:[%s235 + $0xd8] sm:$0xff]
      %v293 = vld [vmem:[%s235 + $0xe0] sm:$0xff]
      %v294 = vld [vmem:[%s235 + $0xe8] sm:$0xff]
      %v295 = vld [vmem:[%s235 + $0xf0] sm:$0xff]
      %v296 = vld [vmem:[%s235 + $0xf8] sm:$0xff]
      %v297 = vld [vmem:[%s235 + $0x100] sm:$0xff]
      %v298 = vld [vmem:[%s235 + $0x108] sm:$0xff]
      %v299 = vld [vmem:[%s235 + $0x110] sm:$0xff]
      %v300 = vld [vmem:[%s235 + $0x118] sm:$0xff]
      %v301 = vld [vmem:[%s235 + $0x120] sm:$0xff]
      %v302 = vld [vmem:[%s235 + $0x128] sm:$0xff]
      %v303 = vld [vmem:[%s235 + $0x130] sm:$0xff]
      %v304 = vld [vmem:[%s235 + $0x138] sm:$0xff]
      %v305 = vld [vmem:[%s235 + $0x140] sm:$0xff]
      %v306 = vld [vmem:[%s235 + $0x148] sm:$0xff]
      %v307 = vld [vmem:[%s235 + $0x150] sm:$0xff]
      %v308 = vld [vmem:[%s235 + $0x158] sm:$0xff]
      %v309 = vld [vmem:[%s235 + $0x160] sm:$0xff]
      %v310 = vld [vmem:[%s235 + $0x168] sm:$0xff]
      %v311 = vld [vmem:[%s235 + $0x170] sm:$0xff]
      %v312 = vld [vmem:[%s235 + $0x178] sm:$0xff]
      %v313 = vld [vmem:[%s235 + $0x180] sm:$0xff]
      %v314 = vld [vmem:[%s235 + $0x188] sm:$0xff]
      %v315 = vld [vmem:[%s235 + $0x190] sm:$0xff]
      %v316 = vld [vmem:[%s235 + $0x198] sm:$0xff]
      %v317 = vld [vmem:[%s235 + $0x1a0] sm:$0xff]
      %v318 = vld [vmem:[%s235 + $0x1a8] sm:$0xff]
      %v319 = vld [vmem:[%s235 + $0x1b0] sm:$0xff]
      %v320 = vld [vmem:[%s235 + $0x1b8] sm:$0xff]
      %v321 = vld [vmem:[%s235 + $0x1c0] sm:$0xff]
      %v322 = vld [vmem:[%s235 + $0x1c8] sm:$0xff]
      %v323 = vld [vmem:[%s235 + $0x1d0] sm:$0xff]
      %v324 = vld [vmem:[%s235 + $0x1d8] sm:$0xff]
      %v325 = vld [vmem:[%s235 + $0x1e0] sm:$0xff]
      %v326 = vld [vmem:[%s235 + $0x1e8] sm:$0xff]
      %v327 = vld [vmem:[%s235 + $0x1f0] sm:$0xff]
      %v328 = vld [vmem:[%s235 + $0x1f8] sm:$0xff]
      %v329 = vld [vmem:[%s235 + $0x200] sm:$0xff]
      %v330 = vld [vmem:[%s235 + $0x208] sm:$0xff]
      %v331 = vld [vmem:[%s235 + $0x210] sm:$0xff]
      %v332 = vld [vmem:[%s235 + $0x218] sm:$0xff]
      %v333 = vld [vmem:[%s235 + $0x220] sm:$0xff]
      %v334 = vld [vmem:[%s235 + $0x228] sm:$0xff]
      %v335 = vld [vmem:[%s235 + $0x230] sm:$0xff]
      %v336 = vld [vmem:[%s235 + $0x238] sm:$0xff]
      %v337 = vld [vmem:[%s235 + $0x240] sm:$0xff]
      %v338 = vld [vmem:[%s235 + $0x248] sm:$0xff]
      %v339 = vld [vmem:[%s235 + $0x250] sm:$0xff]
      %v340 = vld [vmem:[%s235 + $0x258] sm:$0xff]
      %v341 = vld [vmem:[%s235 + $0x260] sm:$0xff]
      %v342 = vld [vmem:[%s235 + $0x268] sm:$0xff]
      %v343 = vld [vmem:[%s235 + $0x270] sm:$0xff]
      %v344 = vld [vmem:[%s235 + $0x278] sm:$0xff]
      %v345 = vld [vmem:[%s235 + $0x280] sm:$0xff]
      %v346 = vld [vmem:[%s235 + $0x288] sm:$0xff]
      %v347 = vld [vmem:[%s235 + $0x290] sm:$0xff]
      %v348 = vld [vmem:[%s235 + $0x298] sm:$0xff]
      %v349 = vld [vmem:[%s235 + $0x2a0] sm:$0xff]
      %v350 = vld [vmem:[%s235 + $0x2a8] sm:$0xff]
      %v351 = vld [vmem:[%s235 + $0x2b0] sm:$0xff]
      %v352 = vld [vmem:[%s235 + $0x2b8] sm:$0xff]
      %v353 = vld [vmem:[%s235 + $0x2c0] sm:$0xff]
      %v354 = vld [vmem:[%s235 + $0x2c8] sm:$0xff]
      %v355 = vld [vmem:[%s235 + $0x2d0] sm:$0xff]
      %v356 = vld [vmem:[%s235 + $0x2d8] sm:$0xff]
      %v357 = vld [vmem:[%s235 + $0x2e0] sm:$0xff]
      %v358 = vld [vmem:[%s235 + $0x2e8] sm:$0xff]
      %v359 = vld [vmem:[%s235 + $0x2f0] sm:$0xff]
      %v360 = vld [vmem:[%s235 + $0x2f8] sm:$0xff]
      %v361 = vld [vmem:[%s235 + $0x300] sm:$0xff]
      %v362 = vld [vmem:[%s235 + $0x308] sm:$0xff]
      %v363 = vld [vmem:[%s235 + $0x310] sm:$0xff]
      %v364 = vld [vmem:[%s235 + $0x318] sm:$0xff]
      %v365 = vld [vmem:[%s235 + $0x320] sm:$0xff]
      %v366 = vld [vmem:[%s235 + $0x328] sm:$0xff]
      %v367 = vld [vmem:[%s235 + $0x330] sm:$0xff]
      %v368 = vld [vmem:[%s235 + $0x338] sm:$0xff]
      %v369 = vld [vmem:[%s235 + $0x340] sm:$0xff]
      %v370 = vld [vmem:[%s235 + $0x348] sm:$0xff]
      %v371 = vld [vmem:[%s235 + $0x350] sm:$0xff]
      %v372 = vld [vmem:[%s235 + $0x358] sm:$0xff]
      %v373 = vld [vmem:[%s235 + $0x360] sm:$0xff]
      %v374 = vld [vmem:[%s235 + $0x368] sm:$0xff]
      %v375 = vld [vmem:[%s235 + $0x370] sm:$0xff]
      %v376 = vld [vmem:[%s235 + $0x378] sm:$0xff]
      %v377 = vld [vmem:[%s235 + $0x380] sm:$0xff]
      %v378 = vld [vmem:[%s235 + $0x388] sm:$0xff]
      %v379 = vld [vmem:[%s235 + $0x390] sm:$0xff]
      %v380 = vld [vmem:[%s235 + $0x398] sm:$0xff]
      %v381 = vld [vmem:[%s235 + $0x3a0] sm:$0xff]
      %v382 = vld [vmem:[%s235 + $0x3a8] sm:$0xff]
      %v383 = vld [vmem:[%s235 + $0x3b0] sm:$0xff]
      %v384 = vld [vmem:[%s235 + $0x3b8] sm:$0xff]
      %v385 = vld [vmem:[%s235 + $0x3c0] sm:$0xff]
      %v386 = vld [vmem:[%s235 + $0x3c8] sm:$0xff]
      %v387 = vld [vmem:[%s235 + $0x3d0] sm:$0xff]
      %v388 = vld [vmem:[%s235 + $0x3d8] sm:$0xff]
      %v389 = vld [vmem:[%s235 + $0x3e0] sm:$0xff]
      %v390 = vld [vmem:[%s235 + $0x3e8] sm:$0xff]
      %v391 = vld [vmem:[%s235 + $0x3f0] sm:$0xff]
      %v392 = vld [vmem:[%s235 + $0x3f8] sm:$0xff]
      %v393 = vld [vmem:[%s235 + $0x400] sm:$0xff]
      %v394 = vld [vmem:[%s235 + $0x408] sm:$0xff]
      %v395 = vld [vmem:[%s235 + $0x410] sm:$0xff]
      %v396 = vld [vmem:[%s235 + $0x418] sm:$0xff]
      %v397 = vld [vmem:[%s235 + $0x420] sm:$0xff]
      %v398 = vld [vmem:[%s235 + $0x428] sm:$0xff]
      %v399 = vld [vmem:[%s235 + $0x430] sm:$0xff]
      %v400 = vld [vmem:[%s235 + $0x438] sm:$0xff]
      %v401 = vld [vmem:[%s235 + $0x440] sm:$0xff]
      %v402 = vld [vmem:[%s235 + $0x448] sm:$0xff]
      %v403 = vld [vmem:[%s235 + $0x450] sm:$0xff]
      %v404 = vld [vmem:[%s235 + $0x458] sm:$0xff]
      %v405 = vld [vmem:[%s235 + $0x460] sm:$0xff]
      %v406 = vld [vmem:[%s235 + $0x468] sm:$0xff]
      %v407 = vld [vmem:[%s235 + $0x470] sm:$0xff]
      %v408 = vld [vmem:[%s235 + $0x478] sm:$0xff]
      %v409 = vld [vmem:[%s235 + $0x480] sm:$0xff]
      %v410 = vld [vmem:[%s235 + $0x488] sm:$0xff]
      %v411 = vld [vmem:[%s235 + $0x490] sm:$0xff]
      %v412 = vld [vmem:[%s235 + $0x498] sm:$0xff]
      %v413 = vld [vmem:[%s235 + $0x4a0] sm:$0xff]
      %v414 = vld [vmem:[%s235 + $0x4a8] sm:$0xff]
      %v415 = vld [vmem:[%s235 + $0x4b0] sm:$0xff]
      %v416 = vld [vmem:[%s235 + $0x4b8] sm:$0xff]
      %v417 = vld [vmem:[%s235 + $0x4c0] sm:$0xff]
      %v418 = vld [vmem:[%s235 + $0x4c8] sm:$0xff]
      %v419 = vld [vmem:[%s235 + $0x4d0] sm:$0xff]
      %v420 = vld [vmem:[%s235 + $0x4d8] sm:$0xff]
      %v421 = vld [vmem:[%s235 + $0x4e0] sm:$0xff]
      %v422 = vld [vmem:[%s235 + $0x4e8] sm:$0xff]
      %v423 = vld [vmem:[%s235 + $0x4f0] sm:$0xff]
      %v424 = vld [vmem:[%s235 + $0x4f8] sm:$0xff]
      %v425 = vld [vmem:[%s235 + $0x500] sm:$0xff]
      %v426 = vld [vmem:[%s235 + $0x508] sm:$0xff]
      %v427 = vld [vmem:[%s235 + $0x510] sm:$0xff]
      %v428 = vld [vmem:[%s235 + $0x518] sm:$0xff]
      %v429 = vld [vmem:[%s235 + $0x520] sm:$0xff]
      %v430 = vld [vmem:[%s235 + $0x528] sm:$0xff]
      %v431 = vld [vmem:[%s235 + $0x530] sm:$0xff]
      %v432 = vld [vmem:[%s235 + $0x538] sm:$0xff]
      %v433 = vld [vmem:[%s235 + $0x540] sm:$0xff]
      %v434 = vld [vmem:[%s235 + $0x548] sm:$0xff]
      %v435 = vld [vmem:[%s235 + $0x550] sm:$0xff]
      %v436 = vld [vmem:[%s235 + $0x558] sm:$0xff]
      %v437 = vld [vmem:[%s235 + $0x560] sm:$0xff]
      %v438 = vld [vmem:[%s235 + $0x568] sm:$0xff]
      %v439 = vld [vmem:[%s235 + $0x570] sm:$0xff]
      %v440 = vld [vmem:[%s235 + $0x578] sm:$0xff]
      %v441 = vld [vmem:[%s235 + $0x580] sm:$0xff]
      %v442 = vld [vmem:[%s235 + $0x588] sm:$0xff]
      %v443 = vld [vmem:[%s235 + $0x590] sm:$0xff]
      %v444 = vld [vmem:[%s235 + $0x598] sm:$0xff]
      %v445 = vld [vmem:[%s235 + $0x5a0] sm:$0xff]
      %v446 = vld [vmem:[%s235 + $0x5a8] sm:$0xff]
      %v447 = vld [vmem:[%s235 + $0x5b0] sm:$0xff]
      %v448 = vld [vmem:[%s235 + $0x5b8] sm:$0xff]
      %v449 = vld [vmem:[%s235 + $0x5c0] sm:$0xff]
      %v450 = vld [vmem:[%s235 + $0x5c8] sm:$0xff]
      %v451 = vld [vmem:[%s235 + $0x5d0] sm:$0xff]
      %v452 = vld [vmem:[%s235 + $0x5d8] sm:$0xff]
      %v453 = vld [vmem:[%s235 + $0x5e0] sm:$0xff]
      %v454 = vld [vmem:[%s235 + $0x5e8] sm:$0xff]
      %v455 = vld [vmem:[%s235 + $0x5f0] sm:$0xff]
      %v456 = vld [vmem:[%s235 + $0x5f8] sm:$0xff]
      %v457 = vld [vmem:[%s235 + $0x600] sm:$0xff]
      %v458 = vld [vmem:[%s235 + $0x608] sm:$0xff]
      %v459 = vld [vmem:[%s235 + $0x610] sm:$0xff]
      %v460 = vld [vmem:[%s235 + $0x618] sm:$0xff]
      %v461 = vld [vmem:[%s235 + $0x620] sm:$0xff]
      %v462 = vld [vmem:[%s235 + $0x628] sm:$0xff]
      %v463 = vld [vmem:[%s235 + $0x630] sm:$0xff]
      %v464 = vld [vmem:[%s235 + $0x638] sm:$0xff]
      %v465 = vld [vmem:[%s235 + $0x640] sm:$0xff]
      %v466 = vld [vmem:[%s235 + $0x648] sm:$0xff]
      %v467 = vld [vmem:[%s235 + $0x650] sm:$0xff]
      %v468 = vld [vmem:[%s235 + $0x658] sm:$0xff]
      %v469 = vld [vmem:[%s235 + $0x660] sm:$0xff]
      %v470 = vld [vmem:[%s235 + $0x668] sm:$0xff]
      %v471 = vld [vmem:[%s235 + $0x670] sm:$0xff]
      %v472 = vld [vmem:[%s235 + $0x678] sm:$0xff]
      %v473 = vld [vmem:[%s235 + $0x680] sm:$0xff]
      %v474 = vld [vmem:[%s235 + $0x688] sm:$0xff]
      %v475 = vld [vmem:[%s235 + $0x690] sm:$0xff]
      %v476 = vld [vmem:[%s235 + $0x698] sm:$0xff]
      %v477 = vld [vmem:[%s235 + $0x6a0] sm:$0xff]
      %v478 = vld [vmem:[%s235 + $0x6a8] sm:$0xff]
      %v479 = vld [vmem:[%s235 + $0x6b0] sm:$0xff]
      %v480 = vld [vmem:[%s235 + $0x6b8] sm:$0xff]
      %v481 = vld [vmem:[%s235 + $0x6c0] sm:$0xff]
      %v482 = vld [vmem:[%s235 + $0x6c8] sm:$0xff]
      %v483 = vld [vmem:[%s235 + $0x6d0] sm:$0xff]
      %v484 = vld [vmem:[%s235 + $0x6d8] sm:$0xff]
      %v485 = vld [vmem:[%s235 + $0x6e0] sm:$0xff]
      %v486 = vld [vmem:[%s235 + $0x6e8] sm:$0xff]
      %v487 = vld [vmem:[%s235 + $0x6f0] sm:$0xff]
      %v488 = vld [vmem:[%s235 + $0x6f8] sm:$0xff]
      %v489 = vld [vmem:[%s235 + $0x700] sm:$0xff]
      %v490 = vld [vmem:[%s235 + $0x708] sm:$0xff]
      %v491 = vld [vmem:[%s235 + $0x710] sm:$0xff]
      %v492 = vld [vmem:[%s235 + $0x718] sm:$0xff]
      %v493 = vld [vmem:[%s235 + $0x720] sm:$0xff]
      %v494 = vld [vmem:[%s235 + $0x728] sm:$0xff]
      %v495 = vld [vmem:[%s235 + $0x730] sm:$0xff]
      %v496 = vld [vmem:[%s235 + $0x738] sm:$0xff]
      %v497 = vld [vmem:[%s235 + $0x740] sm:$0xff]
      %v498 = vld [vmem:[%s235 + $0x748] sm:$0xff]
      %v499 = vld [vmem:[%s235 + $0x750] sm:$0xff]
      %v500 = vld [vmem:[%s235 + $0x758] sm:$0xff]
      %v501 = vld [vmem:[%s235 + $0x760] sm:$0xff]
      %v502 = vld [vmem:[%s235 + $0x768] sm:$0xff]
      %v503 = vld [vmem:[%s235 + $0x770] sm:$0xff]
      %v504 = vld [vmem:[%s235 + $0x778] sm:$0xff]
      %v505 = vld [vmem:[%s235 + $0x780] sm:$0xff]
      %v506 = vld [vmem:[%s235 + $0x788] sm:$0xff]
      %v507 = vld [vmem:[%s235 + $0x790] sm:$0xff]
      %v508 = vld [vmem:[%s235 + $0x798] sm:$0xff]
      %v509 = vld [vmem:[%s235 + $0x7a0] sm:$0xff]
      %v510 = vld [vmem:[%s235 + $0x7a8] sm:$0xff]
      %v511 = vld [vmem:[%s235 + $0x7b0] sm:$0xff]
      %v512 = vld [vmem:[%s235 + $0x7b8] sm:$0xff]
      %v513 = vld [vmem:[%s235 + $0x7c0] sm:$0xff]
      %v514 = vld [vmem:[%s235 + $0x7c8] sm:$0xff]
      %v515 = vld [vmem:[%s235 + $0x7d0] sm:$0xff]
      %v516 = vld [vmem:[%s235 + $0x7d8] sm:$0xff]
      %v517 = vld [vmem:[%s235 + $0x7e0] sm:$0xff]
      %v518 = vld [vmem:[%s235 + $0x7e8] sm:$0xff]
      %v519 = vld [vmem:[%s235 + $0x7f0] sm:$0xff]
      %v520 = vld [vmem:[%s235 + $0x7f8] sm:$0xff]
      %v521 = vld [vmem:[%s235 + $0x800] sm:$0xff]
      %v522 = vld [vmem:[%s235 + $0x808] sm:$0xff]
      %v523 = vld [vmem:[%s235 + $0x810] sm:$0xff]
      %v524 = vld [vmem:[%s235 + $0x818] sm:$0xff]
      %v525 = vld [vmem:[%s235 + $0x820] sm:$0xff]
      %v526 = vld [vmem:[%s235 + $0x828] sm:$0xff]
      %v527 = vld [vmem:[%s235 + $0x830] sm:$0xff]
      %v528 = vld [vmem:[%s235 + $0x838] sm:$0xff]
      %v529 = vld [vmem:[%s235 + $0x840] sm:$0xff]
      %v530 = vld [vmem:[%s235 + $0x848] sm:$0xff]
      %v531 = vld [vmem:[%s235 + $0x850] sm:$0xff]
      %v532 = vld [vmem:[%s235 + $0x858] sm:$0xff]
      %v533 = vld [vmem:[%s235 + $0x860] sm:$0xff]
      %v534 = vld [vmem:[%s235 + $0x868] sm:$0xff]
      %v535 = vld [vmem:[%s235 + $0x870] sm:$0xff]
      %v536 = vld [vmem:[%s235 + $0x878] sm:$0xff]
      %v537 = vld [vmem:[%s235 + $0x880] sm:$0xff]
      %v538 = vld [vmem:[%s235 + $0x888] sm:$0xff]
      %v539 = vld [vmem:[%s235 + $0x890] sm:$0xff]
      %v540 = vld [vmem:[%s235 + $0x898] sm:$0xff]
      %v541 = vld [vmem:[%s235 + $0x8a0] sm:$0xff]
      %v542 = vld [vmem:[%s235 + $0x8a8] sm:$0xff]
      %v543 = vld [vmem:[%s235 + $0x8b0] sm:$0xff]
      %v544 = vld [vmem:[%s235 + $0x8b8] sm:$0xff]
      %v545 = vld [vmem:[%s235 + $0x8c0] sm:$0xff]
      %v546 = vld [vmem:[%s235 + $0x8c8] sm:$0xff]
      %v547 = vld [vmem:[%s235 + $0x8d0] sm:$0xff]
      %v548 = vld [vmem:[%s235 + $0x8d8] sm:$0xff]
      %v549 = vld [vmem:[%s235 + $0x8e0] sm:$0xff]
      %v550 = vld [vmem:[%s235 + $0x8e8] sm:$0xff]
      %v551 = vld [vmem:[%s235 + $0x8f0] sm:$0xff]
      %v552 = vld [vmem:[%s235 + $0x8f8] sm:$0xff]
      %v553 = vld [vmem:[%s235 + $0x900] sm:$0xff]
      %v554 = vld [vmem:[%s235 + $0x908] sm:$0xff]
      %v555 = vld [vmem:[%s235 + $0x910] sm:$0xff]
      %v556 = vld [vmem:[%s235 + $0x918] sm:$0xff]
      %v557 = vld [vmem:[%s235 + $0x920] sm:$0xff]
      %v558 = vld [vmem:[%s235 + $0x928] sm:$0xff]
      %v559 = vld [vmem:[%s235 + $0x930] sm:$0xff]
      %v560 = vld [vmem:[%s235 + $0x938] sm:$0xff]
      %v561 = vld [vmem:[%s235 + $0x940] sm:$0xff]
      %v562 = vld [vmem:[%s235 + $0x948] sm:$0xff]
      %v563 = vld [vmem:[%s235 + $0x950] sm:$0xff]
      %v564 = vld [vmem:[%s235 + $0x958] sm:$0xff]
      %v565 = vld [vmem:[%s235 + $0x960] sm:$0xff]
      %v566 = vld [vmem:[%s235 + $0x968] sm:$0xff]
      %v567 = vld [vmem:[%s235 + $0x970] sm:$0xff]
      %v568 = vld [vmem:[%s235 + $0x978] sm:$0xff]
      %v569 = vld [vmem:[%s235 + $0x980] sm:$0xff]
      %v570 = vld [vmem:[%s235 + $0x988] sm:$0xff]
      %v571 = vld [vmem:[%s235 + $0x990] sm:$0xff]
      %v572 = vld [vmem:[%s235 + $0x998] sm:$0xff]
      %v573 = vld [vmem:[%s235 + $0x9a0] sm:$0xff]
      %v574 = vld [vmem:[%s235 + $0x9a8] sm:$0xff]
      %v575 = vld [vmem:[%s235 + $0x9b0] sm:$0xff]
      %v576 = vld [vmem:[%s235 + $0x9b8] sm:$0xff]
      %v577 = vld [vmem:[%s235 + $0x9c0] sm:$0xff]
      %v578 = vld [vmem:[%s235 + $0x9c8] sm:$0xff]
      %v579 = vld [vmem:[%s235 + $0x9d0] sm:$0xff]
      %v580 = vld [vmem:[%s235 + $0x9d8] sm:$0xff]
      %v581 = vld [vmem:[%s235 + $0x9e0] sm:$0xff]
      %v582 = vld [vmem:[%s235 + $0x9e8] sm:$0xff]
      %v583 = vld [vmem:[%s235 + $0x9f0] sm:$0xff]
      %v584 = vld [vmem:[%s235 + $0x9f8] sm:$0xff]
      %v585 = vld [vmem:[%s235 + $0xa00] sm:$0xff]
      %v586 = vld [vmem:[%s235 + $0xa08] sm:$0xff]
      %v587 = vld [vmem:[%s235 + $0xa10] sm:$0xff]
      %v588 = vld [vmem:[%s235 + $0xa18] sm:$0xff]
      %v589 = vld [vmem:[%s235 + $0xa20] sm:$0xff]
      %v590 = vld [vmem:[%s235 + $0xa28] sm:$0xff]
      %v591 = vld [vmem:[%s235 + $0xa30] sm:$0xff]
      %v592 = vld [vmem:[%s235 + $0xa38] sm:$0xff]
      %v593 = vld [vmem:[%s235 + $0xa40] sm:$0xff]
      %v594 = vld [vmem:[%s235 + $0xa48] sm:$0xff]
      %v595 = vld [vmem:[%s235 + $0xa50] sm:$0xff]
      %v596 = vld [vmem:[%s235 + $0xa58] sm:$0xff]
      %v597 = vld [vmem:[%s235 + $0xa60] sm:$0xff]
      %v598 = vld [vmem:[%s235 + $0xa68] sm:$0xff]
      %v599 = vld [vmem:[%s235 + $0xa70] sm:$0xff]
      %v600 = vld [vmem:[%s235 + $0xa78] sm:$0xff]
      %v601 = vld [vmem:[%s235 + $0xa80] sm:$0xff]
      %v602 = vld [vmem:[%s235 + $0xa88] sm:$0xff]
      %v603 = vld [vmem:[%s235 + $0xa90] sm:$0xff]
      %v604 = vld [vmem:[%s235 + $0xa98] sm:$0xff]
      %v605 = vld [vmem:[%s235 + $0xaa0] sm:$0xff]
      %v606 = vld [vmem:[%s235 + $0xaa8] sm:$0xff]
      %v607 = vld [vmem:[%s235 + $0xab0] sm:$0xff]
      %v608 = vld [vmem:[%s235 + $0xab8] sm:$0xff]
      %v609 = vld [vmem:[%s235 + $0xac0] sm:$0xff]
      %v610 = vld [vmem:[%s235 + $0xac8] sm:$0xff]
      %v611 = vld [vmem:[%s235 + $0xad0] sm:$0xff]
      %v612 = vld [vmem:[%s235 + $0xad8] sm:$0xff]
      %v613 = vld [vmem:[%s235 + $0xae0] sm:$0xff]
      %v614 = vld [vmem:[%s235 + $0xae8] sm:$0xff]
      %v615 = vld [vmem:[%s235 + $0xaf0] sm:$0xff]
      %v616 = vld [vmem:[%s235 + $0xaf8] sm:$0xff]
      %v617 = vld [vmem:[%s235 + $0xb00] sm:$0xff]
      %v618 = vld [vmem:[%s235 + $0xb08] sm:$0xff]
      %v619 = vld [vmem:[%s235 + $0xb10] sm:$0xff]
      %v620 = vld [vmem:[%s235 + $0xb18] sm:$0xff]
      %v621 = vld [vmem:[%s235 + $0xb20] sm:$0xff]
      %v622 = vld [vmem:[%s235 + $0xb28] sm:$0xff]
      %v623 = vld [vmem:[%s235 + $0xb30] sm:$0xff]
      %v624 = vld [vmem:[%s235 + $0xb38] sm:$0xff]
      %v625 = vld [vmem:[%s235 + $0xb40] sm:$0xff]
      %v626 = vld [vmem:[%s235 + $0xb48] sm:$0xff]
      %v627 = vld [vmem:[%s235 + $0xb50] sm:$0xff]
      %v628 = vld [vmem:[%s235 + $0xb58] sm:$0xff]
      %v629 = vld [vmem:[%s235 + $0xb60] sm:$0xff]
      %v630 = vld [vmem:[%s235 + $0xb68] sm:$0xff]
      %v631 = vld [vmem:[%s235 + $0xb70] sm:$0xff]
      %v632 = vld [vmem:[%s235 + $0xb78] sm:$0xff]
      %v633 = vld [vmem:[%s235 + $0xb80] sm:$0xff]
      %v634 = vld [vmem:[%s235 + $0xb88] sm:$0xff]
      %v635 = vld [vmem:[%s235 + $0xb90] sm:$0xff]
      %v636 = vld [vmem:[%s235 + $0xb98] sm:$0xff]
      %v637 = vld [vmem:[%s235 + $0xba0] sm:$0xff]
      %v638 = vld [vmem:[%s235 + $0xba8] sm:$0xff]
      %v639 = vld [vmem:[%s235 + $0xbb0] sm:$0xff]
      %v640 = vld [vmem:[%s235 + $0xbb8] sm:$0xff]
      %v641 = vld [vmem:[%s235 + $0xbc0] sm:$0xff]
      %v642 = vld [vmem:[%s235 + $0xbc8] sm:$0xff]
      %v643 = vld [vmem:[%s235 + $0xbd0] sm:$0xff]
      %v644 = vld [vmem:[%s235 + $0xbd8] sm:$0xff]
      %v645 = vld [vmem:[%s235 + $0xbe0] sm:$0xff]
      %v646 = vld [vmem:[%s235 + $0xbe8] sm:$0xff]
      %v647 = vld [vmem:[%s235 + $0xbf0] sm:$0xff]
      %v648 = vld [vmem:[%s235 + $0xbf8] sm:$0xff]
      %v649 = vld [vmem:[%s235 + $0xc00] sm:$0xff]
      %v650 = vld [vmem:[%s235 + $0xc08] sm:$0xff]
      %v651 = vld [vmem:[%s235 + $0xc10] sm:$0xff]
      %v652 = vld [vmem:[%s235 + $0xc18] sm:$0xff]
      %v653 = vld [vmem:[%s235 + $0xc20] sm:$0xff]
      %v654 = vld [vmem:[%s235 + $0xc28] sm:$0xff]
      %v655 = vld [vmem:[%s235 + $0xc30] sm:$0xff]
      %v656 = vld [vmem:[%s235 + $0xc38] sm:$0xff]
      %v657 = vld [vmem:[%s235 + $0xc40] sm:$0xff]
      %v658 = vld [vmem:[%s235 + $0xc48] sm:$0xff]
      %v659 = vld [vmem:[%s235 + $0xc50] sm:$0xff]
      %v660 = vld [vmem:[%s235 + $0xc58] sm:$0xff]
      %v661 = vld [vmem:[%s235 + $0xc60] sm:$0xff]
      %v662 = vld [vmem:[%s235 + $0xc68] sm:$0xff]
      %v663 = vld [vmem:[%s235 + $0xc70] sm:$0xff]
      %v664 = vld [vmem:[%s235 + $0xc78] sm:$0xff]
      %v678 = vunpack.c.l.b16 %v252
      %v679 = vunpack.c.h.b16 %v252
      %v680 = vunpack.c.l.b16 %v253
      %v681 = vunpack.c.h.b16 %v253
      %v682 = vunpack.c.l.b16 %v254
      %v683 = vunpack.c.h.b16 %v254
      %v684 = vunpack.c.l.b16 %v255
      %v685 = vunpack.c.h.b16 %v255
      %v686 = vunpack.c.l.b16 %v256
      %v687 = vunpack.c.h.b16 %v256
      %v688 = vunpack.c.l.b16 %v257
      %v689 = vunpack.c.h.b16 %v257
      %v690 = vunpack.c.l.b16 %v258
      %v691 = vunpack.c.h.b16 %v258
      %v692 = vunpack.c.l.b16 %v259
      %v693 = vunpack.c.h.b16 %v259
      %v694 = vunpack.c.l.b16 %v260
      %v695 = vunpack.c.h.b16 %v260
      %v696 = vunpack.c.l.b16 %v261
      %v697 = vunpack.c.h.b16 %v261
      %v698 = vunpack.c.l.b16 %v262
      %v699 = vunpack.c.h.b16 %v262
      %v700 = vunpack.c.l.b16 %v263
      %v701 = vunpack.c.h.b16 %v263
      %v702 = vunpack.c.l.b16 %v264
      %v703 = vpack.c.b16 %v678, %v678
      %v704 = vpack.c.b16 %v679, %v679
      %v705 = vpack.c.b16 %v680, %v680
      %v706 = vpack.c.b16 %v681, %v681
      %v707 = vpack.c.b16 %v682, %v682
      %v708 = vpack.c.b16 %v683, %v683
      %v709 = vpack.c.b16 %v684, %v684
      %v710 = vpack.c.b16 %v685, %v685
      %v711 = vpack.c.b16 %v686, %v686
      %v712 = vpack.c.b16 %v687, %v687
      %v713 = vpack.c.b16 %v688, %v688
      %v714 = vpack.c.b16 %v689, %v689
      %v715 = vpack.c.b16 %v690, %v690
      %v716 = vpack.c.b16 %v691, %v691
      %v717 = vpack.c.b16 %v692, %v692
      %v718 = vpack.c.b16 %v693, %v693
      %v719 = vpack.c.b16 %v694, %v694
      %v720 = vpack.c.b16 %v695, %v695
      %v721 = vpack.c.b16 %v696, %v696
      %v722 = vpack.c.b16 %v697, %v697
      %v723 = vpack.c.b16 %v698, %v698
      %v724 = vpack.c.b16 %v699, %v699
      %v725 = vpack.c.b16 %v700, %v700
      %v726 = vpack.c.b16 %v701, %v701
      %v727 = vpack.c.b16 %v702, %v702
      %v1153 = vunpack.c.l.b16 %v265
      %v1154 = vunpack.c.h.b16 %v265
      %v1155 = vunpack.c.l.b16 %v266
      %v1156 = vunpack.c.h.b16 %v266
      %v1157 = vunpack.c.l.b16 %v267
      %v1158 = vunpack.c.h.b16 %v267
      %v1159 = vunpack.c.l.b16 %v268
      %v1160 = vunpack.c.h.b16 %v268
      %v1161 = vunpack.c.l.b16 %v269
      %v1162 = vunpack.c.h.b16 %v269
      %v1163 = vunpack.c.l.b16 %v270
      %v1164 = vunpack.c.h.b16 %v270
      %v1165 = vunpack.c.l.b16 %v271
      %v1166 = vunpack.c.h.b16 %v271
      %v1167 = vunpack.c.l.b16 %v272
      %v1168 = vunpack.c.h.b16 %v272
      %v1169 = vunpack.c.l.b16 %v273
      %v1170 = vunpack.c.h.b16 %v273
      %v1171 = vunpack.c.l.b16 %v274
      %v1172 = vunpack.c.h.b16 %v274
      %v1173 = vunpack.c.l.b16 %v275
      %v1174 = vunpack.c.h.b16 %v275
      %v1175 = vunpack.c.l.b16 %v276
      %v1176 = vunpack.c.h.b16 %v276
      %v1177 = vunpack.c.l.b16 %v277
      %v1178 = vunpack.c.h.b16 %v277
      %v1179 = vunpack.c.l.b16 %v278
      %v1180 = vunpack.c.h.b16 %v278
      %v1181 = vunpack.c.l.b16 %v279
      %v1182 = vunpack.c.h.b16 %v279
      %v1183 = vunpack.c.l.b16 %v280
      %v1184 = vunpack.c.h.b16 %v280
      %v1185 = vunpack.c.l.b16 %v281
      %v1186 = vunpack.c.h.b16 %v281
      %v1187 = vunpack.c.l.b16 %v282
      %v1188 = vunpack.c.h.b16 %v282
      %v1189 = vunpack.c.l.b16 %v283
      %v1190 = vunpack.c.h.b16 %v283
      %v1191 = vunpack.c.l.b16 %v284
      %v1192 = vunpack.c.h.b16 %v284
      %v1193 = vunpack.c.l.b16 %v285
      %v1194 = vunpack.c.h.b16 %v285
      %v1195 = vunpack.c.l.b16 %v286
      %v1196 = vunpack.c.h.b16 %v286
      %v1197 = vunpack.c.l.b16 %v287
      %v1198 = vunpack.c.h.b16 %v287
      %v1199 = vunpack.c.l.b16 %v288
      %v1200 = vunpack.c.h.b16 %v288
      %v1201 = vunpack.c.l.b16 %v289
      %v1202 = vunpack.c.h.b16 %v289
      %v1203 = vunpack.c.l.b16 %v290
      %v1204 = vunpack.c.h.b16 %v290
      %v1205 = vunpack.c.l.b16 %v291
      %v1206 = vunpack.c.h.b16 %v291
      %v1207 = vunpack.c.l.b16 %v292
      %v1208 = vunpack.c.h.b16 %v292
      %v1209 = vunpack.c.l.b16 %v293
      %v1210 = vunpack.c.h.b16 %v293
      %v1211 = vunpack.c.l.b16 %v294
      %v1212 = vunpack.c.h.b16 %v294
      %v1213 = vunpack.c.l.b16 %v295
      %v1214 = vunpack.c.h.b16 %v295
      %v1215 = vunpack.c.l.b16 %v296
      %v1216 = vunpack.c.h.b16 %v296
      %v1217 = vunpack.c.l.b16 %v297
      %v1218 = vunpack.c.h.b16 %v297
      %v1219 = vunpack.c.l.b16 %v298
      %v1220 = vunpack.c.h.b16 %v298
      %v1221 = vunpack.c.l.b16 %v299
      %v1222 = vunpack.c.h.b16 %v299
      %v1223 = vunpack.c.l.b16 %v300
      %v1224 = vunpack.c.h.b16 %v300
      %v1225 = vunpack.c.l.b16 %v301
      %v1226 = vunpack.c.h.b16 %v301
      %v1227 = vunpack.c.l.b16 %v302
      %v1228 = vunpack.c.h.b16 %v302
      %v1229 = vunpack.c.l.b16 %v303
      %v1230 = vunpack.c.h.b16 %v303
      %v1231 = vunpack.c.l.b16 %v304
      %v1232 = vunpack.c.h.b16 %v304
      %v1233 = vunpack.c.l.b16 %v305
      %v1234 = vunpack.c.h.b16 %v305
      %v1235 = vunpack.c.l.b16 %v306
      %v1236 = vunpack.c.h.b16 %v306
      %v1237 = vunpack.c.l.b16 %v307
      %v1238 = vunpack.c.h.b16 %v307
      %v1239 = vunpack.c.l.b16 %v308
      %v1240 = vunpack.c.h.b16 %v308
      %v1241 = vunpack.c.l.b16 %v309
      %v1242 = vunpack.c.h.b16 %v309
      %v1243 = vunpack.c.l.b16 %v310
      %v1244 = vunpack.c.h.b16 %v310
      %v1245 = vunpack.c.l.b16 %v311
      %v1246 = vunpack.c.h.b16 %v311
      %v1247 = vunpack.c.l.b16 %v312
      %v1248 = vunpack.c.h.b16 %v312
      %v1249 = vunpack.c.l.b16 %v313
      %v1250 = vunpack.c.h.b16 %v313
      %v1251 = vunpack.c.l.b16 %v314
      %v1252 = vunpack.c.h.b16 %v314
      %v1253 = vunpack.c.l.b16 %v315
      %v1254 = vunpack.c.h.b16 %v315
      %v1255 = vunpack.c.l.b16 %v316
      %v1256 = vunpack.c.h.b16 %v316
      %v1257 = vunpack.c.l.b16 %v317
      %v1258 = vunpack.c.h.b16 %v317
      %v1259 = vunpack.c.l.b16 %v318
      %v1260 = vunpack.c.h.b16 %v318
      %v1261 = vunpack.c.l.b16 %v319
      %v1262 = vunpack.c.h.b16 %v319
      %v1263 = vunpack.c.l.b16 %v320
      %v1264 = vunpack.c.h.b16 %v320
      %v1265 = vunpack.c.l.b16 %v321
      %v1266 = vunpack.c.h.b16 %v321
      %v1267 = vunpack.c.l.b16 %v322
      %v1268 = vunpack.c.h.b16 %v322
      %v1269 = vunpack.c.l.b16 %v323
      %v1270 = vunpack.c.h.b16 %v323
      %v1271 = vunpack.c.l.b16 %v324
      %v1272 = vunpack.c.h.b16 %v324
      %v1273 = vunpack.c.l.b16 %v325
      %v1274 = vunpack.c.h.b16 %v325
      %v1275 = vunpack.c.l.b16 %v326
      %v1276 = vunpack.c.h.b16 %v326
      %v1277 = vunpack.c.l.b16 %v327
      %v1278 = vunpack.c.h.b16 %v327
      %v1279 = vunpack.c.l.b16 %v328
      %v1280 = vunpack.c.h.b16 %v328
      %v1281 = vunpack.c.l.b16 %v329
      %v1282 = vunpack.c.h.b16 %v329
      %v1283 = vunpack.c.l.b16 %v330
      %v1284 = vunpack.c.h.b16 %v330
      %v1285 = vunpack.c.l.b16 %v331
      %v1286 = vunpack.c.h.b16 %v331
      %v1287 = vunpack.c.l.b16 %v332
      %v1288 = vunpack.c.h.b16 %v332
      %v1289 = vunpack.c.l.b16 %v333
      %v1290 = vunpack.c.h.b16 %v333
      %v1291 = vunpack.c.l.b16 %v334
      %v1292 = vunpack.c.h.b16 %v334
      %v1293 = vunpack.c.l.b16 %v335
      %v1294 = vunpack.c.h.b16 %v335
      %v1295 = vunpack.c.l.b16 %v336
      %v1296 = vunpack.c.h.b16 %v336
      %v1297 = vunpack.c.l.b16 %v337
      %v1298 = vunpack.c.h.b16 %v337
      %v1299 = vunpack.c.l.b16 %v338
      %v1300 = vunpack.c.h.b16 %v338
      %v1301 = vunpack.c.l.b16 %v339
      %v1302 = vunpack.c.h.b16 %v339
      %v1303 = vunpack.c.l.b16 %v340
      %v1304 = vunpack.c.h.b16 %v340
      %v1305 = vunpack.c.l.b16 %v341
      %v1306 = vunpack.c.h.b16 %v341
      %v1307 = vunpack.c.l.b16 %v342
      %v1308 = vunpack.c.h.b16 %v342
      %v1309 = vunpack.c.l.b16 %v343
      %v1310 = vunpack.c.h.b16 %v343
      %v1311 = vunpack.c.l.b16 %v344
      %v1312 = vunpack.c.h.b16 %v344
      %v1313 = vunpack.c.l.b16 %v345
      %v1314 = vunpack.c.h.b16 %v345
      %v1315 = vunpack.c.l.b16 %v346
      %v1316 = vunpack.c.h.b16 %v346
      %v1317 = vunpack.c.l.b16 %v347
      %v1318 = vunpack.c.h.b16 %v347
      %v1319 = vunpack.c.l.b16 %v348
      %v1320 = vunpack.c.h.b16 %v348
      %v1321 = vunpack.c.l.b16 %v349
      %v1322 = vunpack.c.h.b16 %v349
      %v1323 = vunpack.c.l.b16 %v350
      %v1324 = vunpack.c.h.b16 %v350
      %v1325 = vunpack.c.l.b16 %v351
      %v1326 = vunpack.c.h.b16 %v351
      %v1327 = vunpack.c.l.b16 %v352
      %v1328 = vunpack.c.h.b16 %v352
      %v1329 = vunpack.c.l.b16 %v353
      %v1330 = vunpack.c.h.b16 %v353
      %v1331 = vunpack.c.l.b16 %v354
      %v1332 = vunpack.c.h.b16 %v354
      %v1333 = vunpack.c.l.b16 %v355
      %v1334 = vunpack.c.h.b16 %v355
      %v1335 = vunpack.c.l.b16 %v356
      %v1336 = vunpack.c.h.b16 %v356
      %v1337 = vunpack.c.l.b16 %v357
      %v1338 = vunpack.c.h.b16 %v357
      %v1339 = vunpack.c.l.b16 %v358
      %v1340 = vunpack.c.h.b16 %v358
      %v1341 = vunpack.c.l.b16 %v359
      %v1342 = vunpack.c.h.b16 %v359
      %v1343 = vunpack.c.l.b16 %v360
      %v1344 = vunpack.c.h.b16 %v360
      %v1345 = vunpack.c.l.b16 %v361
      %v1346 = vunpack.c.h.b16 %v361
      %v1347 = vunpack.c.l.b16 %v362
      %v1348 = vunpack.c.h.b16 %v362
      %v1349 = vunpack.c.l.b16 %v363
      %v1350 = vunpack.c.h.b16 %v363
      %v1351 = vunpack.c.l.b16 %v364
      %v1352 = vunpack.c.h.b16 %v364
      %v1353 = vunpack.c.l.b16 %v365
      %v1354 = vunpack.c.h.b16 %v365
      %v1355 = vunpack.c.l.b16 %v366
      %v1356 = vunpack.c.h.b16 %v366
      %v1357 = vunpack.c.l.b16 %v367
      %v1358 = vunpack.c.h.b16 %v367
      %v1359 = vunpack.c.l.b16 %v368
      %v1360 = vunpack.c.h.b16 %v368
      %v1361 = vunpack.c.l.b16 %v369
      %v1362 = vunpack.c.h.b16 %v369
      %v1363 = vunpack.c.l.b16 %v370
      %v1364 = vunpack.c.h.b16 %v370
      %v1365 = vunpack.c.l.b16 %v371
      %v1366 = vunpack.c.h.b16 %v371
      %v1367 = vunpack.c.l.b16 %v372
      %v1368 = vunpack.c.h.b16 %v372
      %v1369 = vunpack.c.l.b16 %v373
      %v1370 = vunpack.c.h.b16 %v373
      %v1371 = vunpack.c.l.b16 %v374
      %v1372 = vunpack.c.h.b16 %v374
      %v1373 = vunpack.c.l.b16 %v375
      %v1374 = vunpack.c.h.b16 %v375
      %v1375 = vunpack.c.l.b16 %v376
      %v1376 = vunpack.c.h.b16 %v376
      %v1377 = vunpack.c.l.b16 %v377
      %v1378 = vunpack.c.h.b16 %v377
      %v1379 = vunpack.c.l.b16 %v378
      %v1380 = vunpack.c.h.b16 %v378
      %v1381 = vunpack.c.l.b16 %v379
      %v1382 = vunpack.c.h.b16 %v379
      %v1383 = vunpack.c.l.b16 %v380
      %v1384 = vunpack.c.h.b16 %v380
      %v1385 = vunpack.c.l.b16 %v381
      %v1386 = vunpack.c.h.b16 %v381
      %v1387 = vunpack.c.l.b16 %v382
      %v1388 = vunpack.c.h.b16 %v382
      %v1389 = vunpack.c.l.b16 %v383
      %v1390 = vunpack.c.h.b16 %v383
      %v1391 = vunpack.c.l.b16 %v384
      %v1392 = vunpack.c.h.b16 %v384
      %v1393 = vunpack.c.l.b16 %v385
      %v1394 = vunpack.c.h.b16 %v385
      %v1395 = vunpack.c.l.b16 %v386
      %v1396 = vunpack.c.h.b16 %v386
      %v1397 = vunpack.c.l.b16 %v387
      %v1398 = vunpack.c.h.b16 %v387
      %v1399 = vunpack.c.l.b16 %v388
      %v1400 = vunpack.c.h.b16 %v388
      %v1401 = vunpack.c.l.b16 %v389
      %v1402 = vunpack.c.h.b16 %v389
      %v1403 = vunpack.c.l.b16 %v390
      %v1404 = vunpack.c.h.b16 %v390
      %v1405 = vunpack.c.l.b16 %v391
      %v1406 = vunpack.c.h.b16 %v391
      %v1407 = vunpack.c.l.b16 %v392
      %v1408 = vunpack.c.h.b16 %v392
      %v1409 = vunpack.c.l.b16 %v393
      %v1410 = vunpack.c.h.b16 %v393
      %v1411 = vunpack.c.l.b16 %v394
      %v1412 = vunpack.c.h.b16 %v394
      %v1413 = vunpack.c.l.b16 %v395
      %v1414 = vunpack.c.h.b16 %v395
      %v1415 = vunpack.c.l.b16 %v396
      %v1416 = vunpack.c.h.b16 %v396
      %v1417 = vunpack.c.l.b16 %v397
      %v1418 = vunpack.c.h.b16 %v397
      %v1419 = vunpack.c.l.b16 %v398
      %v1420 = vunpack.c.h.b16 %v398
      %v1421 = vunpack.c.l.b16 %v399
      %v1422 = vunpack.c.h.b16 %v399
      %v1423 = vunpack.c.l.b16 %v400
      %v1424 = vunpack.c.h.b16 %v400
      %v1425 = vunpack.c.l.b16 %v401
      %v1426 = vunpack.c.h.b16 %v401
      %v1427 = vunpack.c.l.b16 %v402
      %v1428 = vunpack.c.h.b16 %v402
      %v1429 = vunpack.c.l.b16 %v403
      %v1430 = vunpack.c.h.b16 %v403
      %v1431 = vunpack.c.l.b16 %v404
      %v1432 = vunpack.c.h.b16 %v404
      %v1433 = vunpack.c.l.b16 %v405
      %v1434 = vunpack.c.h.b16 %v405
      %v1435 = vunpack.c.l.b16 %v406
      %v1436 = vunpack.c.h.b16 %v406
      %v1437 = vunpack.c.l.b16 %v407
      %v1438 = vunpack.c.h.b16 %v407
      %v1439 = vunpack.c.l.b16 %v408
      %v1440 = vunpack.c.h.b16 %v408
      %v1441 = vunpack.c.l.b16 %v409
      %v1442 = vunpack.c.h.b16 %v409
      %v1443 = vunpack.c.l.b16 %v410
      %v1444 = vunpack.c.h.b16 %v410
      %v1445 = vunpack.c.l.b16 %v411
      %v1446 = vunpack.c.h.b16 %v411
      %v1447 = vunpack.c.l.b16 %v412
      %v1448 = vunpack.c.h.b16 %v412
      %v1449 = vunpack.c.l.b16 %v413
      %v1450 = vunpack.c.h.b16 %v413
      %v1451 = vunpack.c.l.b16 %v414
      %v1452 = vunpack.c.h.b16 %v414
      %v1453 = vunpack.c.l.b16 %v415
      %v1454 = vunpack.c.h.b16 %v415
      %v1455 = vunpack.c.l.b16 %v416
      %v1456 = vunpack.c.h.b16 %v416
      %v1457 = vunpack.c.l.b16 %v417
      %v1458 = vunpack.c.h.b16 %v417
      %v1459 = vunpack.c.l.b16 %v418
      %v1460 = vunpack.c.h.b16 %v418
      %v1461 = vunpack.c.l.b16 %v419
      %v1462 = vunpack.c.h.b16 %v419
      %v1463 = vunpack.c.l.b16 %v420
      %v1464 = vunpack.c.h.b16 %v420
      %v1465 = vunpack.c.l.b16 %v421
      %v1466 = vunpack.c.h.b16 %v421
      %v1467 = vunpack.c.l.b16 %v422
      %v1468 = vunpack.c.h.b16 %v422
      %v1469 = vunpack.c.l.b16 %v423
      %v1470 = vunpack.c.h.b16 %v423
      %v1471 = vunpack.c.l.b16 %v424
      %v1472 = vunpack.c.h.b16 %v424
      %v1473 = vunpack.c.l.b16 %v425
      %v1474 = vunpack.c.h.b16 %v425
      %v1475 = vunpack.c.l.b16 %v426
      %v1476 = vunpack.c.h.b16 %v426
      %v1477 = vunpack.c.l.b16 %v427
      %v1478 = vunpack.c.h.b16 %v427
      %v1479 = vunpack.c.l.b16 %v428
      %v1480 = vunpack.c.h.b16 %v428
      %v1481 = vunpack.c.l.b16 %v429
      %v1482 = vunpack.c.h.b16 %v429
      %v1483 = vunpack.c.l.b16 %v430
      %v1484 = vunpack.c.h.b16 %v430
      %v1485 = vunpack.c.l.b16 %v431
      %v1486 = vunpack.c.h.b16 %v431
      %v1487 = vunpack.c.l.b16 %v432
      %v1488 = vunpack.c.h.b16 %v432
      %v1489 = vunpack.c.l.b16 %v433
      %v1490 = vunpack.c.h.b16 %v433
      %v1491 = vunpack.c.l.b16 %v434
      %v1492 = vunpack.c.h.b16 %v434
      %v1493 = vunpack.c.l.b16 %v435
      %v1494 = vunpack.c.h.b16 %v435
      %v1495 = vunpack.c.l.b16 %v436
      %v1496 = vunpack.c.h.b16 %v436
      %v1497 = vunpack.c.l.b16 %v437
      %v1498 = vunpack.c.h.b16 %v437
      %v1499 = vunpack.c.l.b16 %v438
      %v1500 = vunpack.c.h.b16 %v438
      %v1501 = vunpack.c.l.b16 %v439
      %v1502 = vunpack.c.h.b16 %v439
      %v1503 = vunpack.c.l.b16 %v440
      %v1504 = vunpack.c.h.b16 %v440
      %v1505 = vunpack.c.l.b16 %v441
      %v1506 = vunpack.c.h.b16 %v441
      %v1507 = vunpack.c.l.b16 %v442
      %v1508 = vunpack.c.h.b16 %v442
      %v1509 = vunpack.c.l.b16 %v443
      %v1510 = vunpack.c.h.b16 %v443
      %v1511 = vunpack.c.l.b16 %v444
      %v1512 = vunpack.c.h.b16 %v444
      %v1513 = vunpack.c.l.b16 %v445
      %v1514 = vunpack.c.h.b16 %v445
      %v1515 = vunpack.c.l.b16 %v446
      %v1516 = vunpack.c.h.b16 %v446
      %v1517 = vunpack.c.l.b16 %v447
      %v1518 = vunpack.c.h.b16 %v447
      %v1519 = vunpack.c.l.b16 %v448
      %v1520 = vunpack.c.h.b16 %v448
      %v1521 = vunpack.c.l.b16 %v449
      %v1522 = vunpack.c.h.b16 %v449
      %v1523 = vunpack.c.l.b16 %v450
      %v1524 = vunpack.c.h.b16 %v450
      %v1525 = vunpack.c.l.b16 %v451
      %v1526 = vunpack.c.h.b16 %v451
      %v1527 = vunpack.c.l.b16 %v452
      %v1528 = vunpack.c.h.b16 %v452
      %v1529 = vunpack.c.l.b16 %v453
      %v1530 = vunpack.c.h.b16 %v453
      %v1531 = vunpack.c.l.b16 %v454
      %v1532 = vunpack.c.h.b16 %v454
      %v1533 = vunpack.c.l.b16 %v455
      %v1534 = vunpack.c.h.b16 %v455
      %v1535 = vunpack.c.l.b16 %v456
      %v1536 = vunpack.c.h.b16 %v456
      %v1537 = vunpack.c.l.b16 %v457
      %v1538 = vunpack.c.h.b16 %v457
      %v1539 = vunpack.c.l.b16 %v458
      %v1540 = vunpack.c.h.b16 %v458
      %v1541 = vunpack.c.l.b16 %v459
      %v1542 = vunpack.c.h.b16 %v459
      %v1543 = vunpack.c.l.b16 %v460
      %v1544 = vunpack.c.h.b16 %v460
      %v1545 = vunpack.c.l.b16 %v461
      %v1546 = vunpack.c.h.b16 %v461
      %v1547 = vunpack.c.l.b16 %v462
      %v1548 = vunpack.c.h.b16 %v462
      %v1549 = vunpack.c.l.b16 %v463
      %v1550 = vunpack.c.h.b16 %v463
      %v1551 = vunpack.c.l.b16 %v464
      %v1552 = vunpack.c.h.b16 %v464
      %v1553 = vunpack.c.l.b16 %v465
      %v1554 = vunpack.c.h.b16 %v465
      %v1555 = vunpack.c.l.b16 %v466
      %v1556 = vunpack.c.h.b16 %v466
      %v1557 = vunpack.c.l.b16 %v467
      %v1558 = vunpack.c.h.b16 %v467
      %v1559 = vunpack.c.l.b16 %v468
      %v1560 = vunpack.c.h.b16 %v468
      %v1561 = vunpack.c.l.b16 %v469
      %v1562 = vunpack.c.h.b16 %v469
      %v1563 = vunpack.c.l.b16 %v470
      %v1564 = vunpack.c.h.b16 %v470
      %v1565 = vunpack.c.l.b16 %v471
      %v1566 = vunpack.c.h.b16 %v471
      %v1567 = vunpack.c.l.b16 %v472
      %v1568 = vunpack.c.h.b16 %v472
      %v1569 = vunpack.c.l.b16 %v473
      %v1570 = vunpack.c.h.b16 %v473
      %v1571 = vunpack.c.l.b16 %v474
      %v1572 = vunpack.c.h.b16 %v474
      %v1573 = vunpack.c.l.b16 %v475
      %v1574 = vunpack.c.h.b16 %v475
      %v1575 = vunpack.c.l.b16 %v476
      %v1576 = vunpack.c.h.b16 %v476
      %v1577 = vunpack.c.l.b16 %v477
      %v1578 = vunpack.c.h.b16 %v477
      %v1579 = vunpack.c.l.b16 %v478
      %v1580 = vunpack.c.h.b16 %v478
      %v1581 = vunpack.c.l.b16 %v479
      %v1582 = vunpack.c.h.b16 %v479
      %v1583 = vunpack.c.l.b16 %v480
      %v1584 = vunpack.c.h.b16 %v480
      %v1585 = vunpack.c.l.b16 %v481
      %v1586 = vunpack.c.h.b16 %v481
      %v1587 = vunpack.c.l.b16 %v482
      %v1588 = vunpack.c.h.b16 %v482
      %v1589 = vunpack.c.l.b16 %v483
      %v1590 = vunpack.c.h.b16 %v483
      %v1591 = vunpack.c.l.b16 %v484
      %v1592 = vunpack.c.h.b16 %v484
      %v1593 = vunpack.c.l.b16 %v485
      %v1594 = vunpack.c.h.b16 %v485
      %v1595 = vunpack.c.l.b16 %v486
      %v1596 = vunpack.c.h.b16 %v486
      %v1597 = vunpack.c.l.b16 %v487
      %v1598 = vunpack.c.h.b16 %v487
      %v1599 = vunpack.c.l.b16 %v488
      %v1600 = vunpack.c.h.b16 %v488
      %v1601 = vunpack.c.l.b16 %v489
      %v1602 = vunpack.c.h.b16 %v489
      %v1603 = vunpack.c.l.b16 %v490
      %v1604 = vunpack.c.h.b16 %v490
      %v1605 = vunpack.c.l.b16 %v491
      %v1606 = vunpack.c.h.b16 %v491
      %v1607 = vunpack.c.l.b16 %v492
      %v1608 = vunpack.c.h.b16 %v492
      %v1609 = vunpack.c.l.b16 %v493
      %v1610 = vunpack.c.h.b16 %v493
      %v1611 = vunpack.c.l.b16 %v494
      %v1612 = vunpack.c.h.b16 %v494
      %v1613 = vunpack.c.l.b16 %v495
      %v1614 = vunpack.c.h.b16 %v495
      %v1615 = vunpack.c.l.b16 %v496
      %v1616 = vunpack.c.h.b16 %v496
      %v1617 = vunpack.c.l.b16 %v497
      %v1618 = vunpack.c.h.b16 %v497
      %v1619 = vunpack.c.l.b16 %v498
      %v1620 = vunpack.c.h.b16 %v498
      %v1621 = vunpack.c.l.b16 %v499
      %v1622 = vunpack.c.h.b16 %v499
      %v1623 = vunpack.c.l.b16 %v500
      %v1624 = vunpack.c.h.b16 %v500
      %v1625 = vunpack.c.l.b16 %v501
      %v1626 = vunpack.c.h.b16 %v501
      %v1627 = vunpack.c.l.b16 %v502
      %v1628 = vunpack.c.h.b16 %v502
      %v1629 = vunpack.c.l.b16 %v503
      %v1630 = vunpack.c.h.b16 %v503
      %v1631 = vunpack.c.l.b16 %v504
      %v1632 = vunpack.c.h.b16 %v504
      %v1633 = vunpack.c.l.b16 %v505
      %v1634 = vunpack.c.h.b16 %v505
      %v1635 = vunpack.c.l.b16 %v506
      %v1636 = vunpack.c.h.b16 %v506
      %v1637 = vunpack.c.l.b16 %v507
      %v1638 = vunpack.c.h.b16 %v507
      %v1639 = vunpack.c.l.b16 %v508
      %v1640 = vunpack.c.h.b16 %v508
      %v1641 = vunpack.c.l.b16 %v509
      %v1642 = vunpack.c.h.b16 %v509
      %v1643 = vunpack.c.l.b16 %v510
      %v1644 = vunpack.c.h.b16 %v510
      %v1645 = vunpack.c.l.b16 %v511
      %v1646 = vunpack.c.h.b16 %v511
      %v1647 = vunpack.c.l.b16 %v512
      %v1648 = vunpack.c.h.b16 %v512
      %v1649 = vunpack.c.l.b16 %v513
      %v1650 = vunpack.c.h.b16 %v513
      %v1651 = vunpack.c.l.b16 %v514
      %v1652 = vunpack.c.h.b16 %v514
      %v1653 = vunpack.c.l.b16 %v515
      %v1654 = vunpack.c.h.b16 %v515
      %v1655 = vunpack.c.l.b16 %v516
      %v1656 = vunpack.c.h.b16 %v516
      %v1657 = vunpack.c.l.b16 %v517
      %v1658 = vunpack.c.h.b16 %v517
      %v1659 = vunpack.c.l.b16 %v518
      %v1660 = vunpack.c.h.b16 %v518
      %v1661 = vunpack.c.l.b16 %v519
      %v1662 = vunpack.c.h.b16 %v519
      %v1663 = vunpack.c.l.b16 %v520
      %v1664 = vunpack.c.h.b16 %v520
      %v1665 = vunpack.c.l.b16 %v521
      %v1666 = vunpack.c.h.b16 %v521
      %v1667 = vunpack.c.l.b16 %v522
      %v1668 = vunpack.c.h.b16 %v522
      %v1669 = vunpack.c.l.b16 %v523
      %v1670 = vunpack.c.h.b16 %v523
      %v1671 = vunpack.c.l.b16 %v524
      %v1672 = vunpack.c.h.b16 %v524
      %v1673 = vunpack.c.l.b16 %v525
      %v1674 = vunpack.c.h.b16 %v525
      %v1675 = vunpack.c.l.b16 %v526
      %v1676 = vunpack.c.h.b16 %v526
      %v1677 = vunpack.c.l.b16 %v527
      %v1678 = vunpack.c.h.b16 %v527
      %v1679 = vunpack.c.l.b16 %v528
      %v1680 = vunpack.c.h.b16 %v528
      %v1681 = vunpack.c.l.b16 %v529
      %v1682 = vunpack.c.h.b16 %v529
      %v1683 = vunpack.c.l.b16 %v530
      %v1684 = vunpack.c.h.b16 %v530
      %v1685 = vunpack.c.l.b16 %v531
      %v1686 = vunpack.c.h.b16 %v531
      %v1687 = vunpack.c.l.b16 %v532
      %v1688 = vunpack.c.h.b16 %v532
      %v1689 = vunpack.c.l.b16 %v533
      %v1690 = vunpack.c.h.b16 %v533
      %v1691 = vunpack.c.l.b16 %v534
      %v1692 = vunpack.c.h.b16 %v534
      %v1693 = vunpack.c.l.b16 %v535
      %v1694 = vunpack.c.h.b16 %v535
      %v1695 = vunpack.c.l.b16 %v536
      %v1696 = vunpack.c.h.b16 %v536
      %v1697 = vunpack.c.l.b16 %v537
      %v1698 = vunpack.c.h.b16 %v537
      %v1699 = vunpack.c.l.b16 %v538
      %v1700 = vunpack.c.h.b16 %v538
      %v1701 = vunpack.c.l.b16 %v539
      %v1702 = vunpack.c.h.b16 %v539
      %v1703 = vunpack.c.l.b16 %v540
      %v1704 = vunpack.c.h.b16 %v540
      %v1705 = vunpack.c.l.b16 %v541
      %v1706 = vunpack.c.h.b16 %v541
      %v1707 = vunpack.c.l.b16 %v542
      %v1708 = vunpack.c.h.b16 %v542
      %v1709 = vunpack.c.l.b16 %v543
      %v1710 = vunpack.c.h.b16 %v543
      %v1711 = vunpack.c.l.b16 %v544
      %v1712 = vunpack.c.h.b16 %v544
      %v1713 = vunpack.c.l.b16 %v545
      %v1714 = vunpack.c.h.b16 %v545
      %v1715 = vunpack.c.l.b16 %v546
      %v1716 = vunpack.c.h.b16 %v546
      %v1717 = vunpack.c.l.b16 %v547
      %v1718 = vunpack.c.h.b16 %v547
      %v1719 = vunpack.c.l.b16 %v548
      %v1720 = vunpack.c.h.b16 %v548
      %v1721 = vunpack.c.l.b16 %v549
      %v1722 = vunpack.c.h.b16 %v549
      %v1723 = vunpack.c.l.b16 %v550
      %v1724 = vunpack.c.h.b16 %v550
      %v1725 = vunpack.c.l.b16 %v551
      %v1726 = vunpack.c.h.b16 %v551
      %v1727 = vunpack.c.l.b16 %v552
      %v1728 = vunpack.c.h.b16 %v552
      %v1729 = vunpack.c.l.b16 %v553
      %v1730 = vunpack.c.h.b16 %v553
      %v1731 = vunpack.c.l.b16 %v554
      %v1732 = vunpack.c.h.b16 %v554
      %v1733 = vunpack.c.l.b16 %v555
      %v1734 = vunpack.c.h.b16 %v555
      %v1735 = vunpack.c.l.b16 %v556
      %v1736 = vunpack.c.h.b16 %v556
      %v1737 = vunpack.c.l.b16 %v557
      %v1738 = vunpack.c.h.b16 %v557
      %v1739 = vunpack.c.l.b16 %v558
      %v1740 = vunpack.c.h.b16 %v558
      %v1741 = vunpack.c.l.b16 %v559
      %v1742 = vunpack.c.h.b16 %v559
      %v1743 = vunpack.c.l.b16 %v560
      %v1744 = vunpack.c.h.b16 %v560
      %v1745 = vunpack.c.l.b16 %v561
      %v1746 = vunpack.c.h.b16 %v561
      %v1747 = vunpack.c.l.b16 %v562
      %v1748 = vunpack.c.h.b16 %v562
      %v1749 = vunpack.c.l.b16 %v563
      %v1750 = vunpack.c.h.b16 %v563
      %v1751 = vunpack.c.l.b16 %v564
      %v1752 = vunpack.c.h.b16 %v564
      %v1753 = vunpack.c.l.b16 %v565
      %v1754 = vunpack.c.h.b16 %v565
      %v1755 = vunpack.c.l.b16 %v566
      %v1756 = vunpack.c.h.b16 %v566
      %v1757 = vunpack.c.l.b16 %v567
      %v1758 = vunpack.c.h.b16 %v567
      %v1759 = vunpack.c.l.b16 %v568
      %v1760 = vunpack.c.h.b16 %v568
      %v1761 = vunpack.c.l.b16 %v569
      %v1762 = vunpack.c.h.b16 %v569
      %v1763 = vunpack.c.l.b16 %v570
      %v1764 = vunpack.c.h.b16 %v570
      %v1765 = vunpack.c.l.b16 %v571
      %v1766 = vunpack.c.h.b16 %v571
      %v1767 = vunpack.c.l.b16 %v572
      %v1768 = vunpack.c.h.b16 %v572
      %v1769 = vunpack.c.l.b16 %v573
      %v1770 = vunpack.c.h.b16 %v573
      %v1771 = vunpack.c.l.b16 %v574
      %v1772 = vunpack.c.h.b16 %v574
      %v1773 = vunpack.c.l.b16 %v575
      %v1774 = vunpack.c.h.b16 %v575
      %v1775 = vunpack.c.l.b16 %v576
      %v1776 = vunpack.c.h.b16 %v576
      %v1777 = vunpack.c.l.b16 %v577
      %v1778 = vunpack.c.h.b16 %v577
      %v1779 = vunpack.c.l.b16 %v578
      %v1780 = vunpack.c.h.b16 %v578
      %v1781 = vunpack.c.l.b16 %v579
      %v1782 = vunpack.c.h.b16 %v579
      %v1783 = vunpack.c.l.b16 %v580
      %v1784 = vunpack.c.h.b16 %v580
      %v1785 = vunpack.c.l.b16 %v581
      %v1786 = vunpack.c.h.b16 %v581
      %v1787 = vunpack.c.l.b16 %v582
      %v1788 = vunpack.c.h.b16 %v582
      %v1789 = vunpack.c.l.b16 %v583
      %v1790 = vunpack.c.h.b16 %v583
      %v1791 = vunpack.c.l.b16 %v584
      %v1792 = vunpack.c.h.b16 %v584
      %v1793 = vunpack.c.l.b16 %v585
      %v1794 = vunpack.c.h.b16 %v585
      %v1795 = vunpack.c.l.b16 %v586
      %v1796 = vunpack.c.h.b16 %v586
      %v1797 = vunpack.c.l.b16 %v587
      %v1798 = vunpack.c.h.b16 %v587
      %v1799 = vunpack.c.l.b16 %v588
      %v1800 = vunpack.c.h.b16 %v588
      %v1801 = vunpack.c.l.b16 %v589
      %v1802 = vunpack.c.h.b16 %v589
      %v1803 = vunpack.c.l.b16 %v590
      %v1804 = vunpack.c.h.b16 %v590
      %v1805 = vunpack.c.l.b16 %v591
      %v1806 = vunpack.c.h.b16 %v591
      %v1807 = vunpack.c.l.b16 %v592
      %v1808 = vunpack.c.h.b16 %v592
      %v1809 = vunpack.c.l.b16 %v593
      %v1810 = vunpack.c.h.b16 %v593
      %v1811 = vunpack.c.l.b16 %v594
      %v1812 = vunpack.c.h.b16 %v594
      %v1813 = vunpack.c.l.b16 %v595
      %v1814 = vunpack.c.h.b16 %v595
      %v1815 = vunpack.c.l.b16 %v596
      %v1816 = vunpack.c.h.b16 %v596
      %v1817 = vunpack.c.l.b16 %v597
      %v1818 = vunpack.c.h.b16 %v597
      %v1819 = vunpack.c.l.b16 %v598
      %v1820 = vunpack.c.h.b16 %v598
      %v1821 = vunpack.c.l.b16 %v599
      %v1822 = vunpack.c.h.b16 %v599
      %v1823 = vunpack.c.l.b16 %v600
      %v1824 = vunpack.c.h.b16 %v600
      %v1825 = vunpack.c.l.b16 %v601
      %v1826 = vunpack.c.h.b16 %v601
      %v1827 = vunpack.c.l.b16 %v602
      %v1828 = vunpack.c.h.b16 %v602
      %v1829 = vunpack.c.l.b16 %v603
      %v1830 = vunpack.c.h.b16 %v603
      %v1831 = vunpack.c.l.b16 %v604
      %v1832 = vunpack.c.h.b16 %v604
      %v1833 = vunpack.c.l.b16 %v605
      %v1834 = vunpack.c.h.b16 %v605
      %v1835 = vunpack.c.l.b16 %v606
      %v1836 = vunpack.c.h.b16 %v606
      %v1837 = vunpack.c.l.b16 %v607
      %v1838 = vunpack.c.h.b16 %v607
      %v1839 = vunpack.c.l.b16 %v608
      %v1840 = vunpack.c.h.b16 %v608
      %v1841 = vunpack.c.l.b16 %v609
      %v1842 = vunpack.c.h.b16 %v609
      %v1843 = vunpack.c.l.b16 %v610
      %v1844 = vunpack.c.h.b16 %v610
      %v1845 = vunpack.c.l.b16 %v611
      %v1846 = vunpack.c.h.b16 %v611
      %v1847 = vunpack.c.l.b16 %v612
      %v1848 = vunpack.c.h.b16 %v612
      %v1849 = vunpack.c.l.b16 %v613
      %v1850 = vunpack.c.h.b16 %v613
      %v1851 = vunpack.c.l.b16 %v614
      %v1852 = vunpack.c.h.b16 %v614
      %v1853 = vunpack.c.l.b16 %v615
      %v1854 = vunpack.c.h.b16 %v615
      %v1855 = vunpack.c.l.b16 %v616
      %v1856 = vunpack.c.h.b16 %v616
      %v1857 = vunpack.c.l.b16 %v617
      %v1858 = vunpack.c.h.b16 %v617
      %v1859 = vunpack.c.l.b16 %v618
      %v1860 = vunpack.c.h.b16 %v618
      %v1861 = vunpack.c.l.b16 %v619
      %v1862 = vunpack.c.h.b16 %v619
      %v1863 = vunpack.c.l.b16 %v620
      %v1864 = vunpack.c.h.b16 %v620
      %v1865 = vunpack.c.l.b16 %v621
      %v1866 = vunpack.c.h.b16 %v621
      %v1867 = vunpack.c.l.b16 %v622
      %v1868 = vunpack.c.h.b16 %v622
      %v1869 = vunpack.c.l.b16 %v623
      %v1870 = vunpack.c.h.b16 %v623
      %v1871 = vunpack.c.l.b16 %v624
      %v1872 = vunpack.c.h.b16 %v624
      %v1873 = vunpack.c.l.b16 %v625
      %v1874 = vunpack.c.h.b16 %v625
      %v1875 = vunpack.c.l.b16 %v626
      %v1876 = vunpack.c.h.b16 %v626
      %v1877 = vunpack.c.l.b16 %v627
      %v1878 = vunpack.c.h.b16 %v627
      %v1879 = vunpack.c.l.b16 %v628
      %v1880 = vunpack.c.h.b16 %v628
      %v1881 = vunpack.c.l.b16 %v629
      %v1882 = vunpack.c.h.b16 %v629
      %v1883 = vunpack.c.l.b16 %v630
      %v1884 = vunpack.c.h.b16 %v630
      %v1885 = vunpack.c.l.b16 %v631
      %v1886 = vunpack.c.h.b16 %v631
      %v1887 = vunpack.c.l.b16 %v632
      %v1888 = vunpack.c.h.b16 %v632
      %v1889 = vunpack.c.l.b16 %v633
      %v1890 = vunpack.c.h.b16 %v633
      %v1891 = vunpack.c.l.b16 %v634
      %v1892 = vunpack.c.h.b16 %v634
      %v1893 = vunpack.c.l.b16 %v635
      %v1894 = vunpack.c.h.b16 %v635
      %v1895 = vunpack.c.l.b16 %v636
      %v1896 = vunpack.c.h.b16 %v636
      %v1897 = vunpack.c.l.b16 %v637
      %v1898 = vunpack.c.h.b16 %v637
      %v1899 = vunpack.c.l.b16 %v638
      %v1900 = vunpack.c.h.b16 %v638
      %v1901 = vunpack.c.l.b16 %v639
      %v1902 = vunpack.c.h.b16 %v639
      %v1903 = vunpack.c.l.b16 %v640
      %v1904 = vunpack.c.h.b16 %v640
      %v1905 = vunpack.c.l.b16 %v641
      %v1906 = vunpack.c.h.b16 %v641
      %v1907 = vunpack.c.l.b16 %v642
      %v1908 = vunpack.c.h.b16 %v642
      %v1909 = vunpack.c.l.b16 %v643
      %v1910 = vunpack.c.h.b16 %v643
      %v1911 = vunpack.c.l.b16 %v644
      %v1912 = vunpack.c.h.b16 %v644
      %v1913 = vunpack.c.l.b16 %v645
      %v1914 = vunpack.c.h.b16 %v645
      %v1915 = vunpack.c.l.b16 %v646
      %v1916 = vunpack.c.h.b16 %v646
      %v1917 = vunpack.c.l.b16 %v647
      %v1918 = vunpack.c.h.b16 %v647
      %v1919 = vunpack.c.l.b16 %v648
      %v1920 = vunpack.c.h.b16 %v648
      %v1921 = vunpack.c.l.b16 %v649
      %v1922 = vunpack.c.h.b16 %v649
      %v1923 = vunpack.c.l.b16 %v650
      %v1924 = vunpack.c.h.b16 %v650
      %v1925 = vunpack.c.l.b16 %v651
      %v1926 = vunpack.c.h.b16 %v651
      %v1927 = vunpack.c.l.b16 %v652
      %v1928 = vunpack.c.h.b16 %v652
      %v1929 = vunpack.c.l.b16 %v653
      %v1930 = vunpack.c.h.b16 %v653
      %v1931 = vunpack.c.l.b16 %v654
      %v1932 = vunpack.c.h.b16 %v654
      %v1933 = vunpack.c.l.b16 %v655
      %v1934 = vunpack.c.h.b16 %v655
      %v1935 = vunpack.c.l.b16 %v656
      %v1936 = vunpack.c.h.b16 %v656
      %v1937 = vunpack.c.l.b16 %v657
      %v1938 = vunpack.c.h.b16 %v657
      %v1939 = vunpack.c.l.b16 %v658
      %v1940 = vunpack.c.h.b16 %v658
      %v1941 = vunpack.c.l.b16 %v659
      %v1942 = vunpack.c.h.b16 %v659
      %v1943 = vunpack.c.l.b16 %v660
      %v1944 = vunpack.c.h.b16 %v660
      %v1945 = vunpack.c.l.b16 %v661
      %v1946 = vunpack.c.h.b16 %v661
      %v1947 = vunpack.c.l.b16 %v662
      %v1948 = vunpack.c.h.b16 %v662
      %v1949 = vunpack.c.l.b16 %v663
      %v1950 = vunpack.c.h.b16 %v663
      %v1951 = vunpack.c.l.b16 %v664
      %v1952 = vunpack.c.h.b16 %v664
      %v1953 = vpack.c.b16 %v1155, %v1153
      %v1954 = vpack.c.b16 %v1156, %v1154
      %v1955 = vpack.c.b16 %v1159, %v1157
      %v1956 = vpack.c.b16 %v1160, %v1158
      %v1957 = vpack.c.b16 %v1163, %v1161
      %v1958 = vpack.c.b16 %v1164, %v1162
      %v1959 = vpack.c.b16 %v1167, %v1165
      %v1960 = vpack.c.b16 %v1168, %v1166
      %v1961 = vpack.c.b16 %v1171, %v1169
      %v1962 = vpack.c.b16 %v1172, %v1170
      %v1963 = vpack.c.b16 %v1175, %v1173
      %v1964 = vpack.c.b16 %v1176, %v1174
      %v1965 = vpack.c.b16 %v1179, %v1177
      %v1966 = vpack.c.b16 %v1180, %v1178
      %v1967 = vpack.c.b16 %v1183, %v1181
      %v1968 = vpack.c.b16 %v1184, %v1182
      %v1969 = vpack.c.b16 %v1187, %v1185
      %v1970 = vpack.c.b16 %v1188, %v1186
      %v1971 = vpack.c.b16 %v1191, %v1189
      %v1972 = vpack.c.b16 %v1192, %v1190
      %v1973 = vpack.c.b16 %v1195, %v1193
      %v1974 = vpack.c.b16 %v1196, %v1194
      %v1975 = vpack.c.b16 %v1199, %v1197
      %v1976 = vpack.c.b16 %v1200, %v1198
      %v1977 = vpack.c.b16 %v1203, %v1201
      %v1978 = vpack.c.b16 %v1204, %v1202
      %v1979 = vpack.c.b16 %v1207, %v1205
      %v1980 = vpack.c.b16 %v1208, %v1206
      %v1981 = vpack.c.b16 %v1211, %v1209
      %v1982 = vpack.c.b16 %v1212, %v1210
      %v1983 = vpack.c.b16 %v1215, %v1213
      %v1984 = vpack.c.b16 %v1216, %v1214
      %v1985 = vpack.c.b16 %v1219, %v1217
      %v1986 = vpack.c.b16 %v1220, %v1218
      %v1987 = vpack.c.b16 %v1223, %v1221
      %v1988 = vpack.c.b16 %v1224, %v1222
      %v1989 = vpack.c.b16 %v1227, %v1225
      %v1990 = vpack.c.b16 %v1228, %v1226
      %v1991 = vpack.c.b16 %v1231, %v1229
      %v1992 = vpack.c.b16 %v1232, %v1230
      %v1993 = vpack.c.b16 %v1235, %v1233
      %v1994 = vpack.c.b16 %v1236, %v1234
      %v1995 = vpack.c.b16 %v1239, %v1237
      %v1996 = vpack.c.b16 %v1240, %v1238
      %v1997 = vpack.c.b16 %v1243, %v1241
      %v1998 = vpack.c.b16 %v1244, %v1242
      %v1999 = vpack.c.b16 %v1247, %v1245
      %v2000 = vpack.c.b16 %v1248, %v1246
      %v2001 = vpack.c.b16 %v1251, %v1249
      %v2002 = vpack.c.b16 %v1252, %v1250
      %v2003 = vpack.c.b16 %v1255, %v1253
      %v2004 = vpack.c.b16 %v1256, %v1254
      %v2005 = vpack.c.b16 %v1259, %v1257
      %v2006 = vpack.c.b16 %v1260, %v1258
      %v2007 = vpack.c.b16 %v1263, %v1261
      %v2008 = vpack.c.b16 %v1264, %v1262
      %v2009 = vpack.c.b16 %v1267, %v1265
      %v2010 = vpack.c.b16 %v1268, %v1266
      %v2011 = vpack.c.b16 %v1271, %v1269
      %v2012 = vpack.c.b16 %v1272, %v1270
      %v2013 = vpack.c.b16 %v1275, %v1273
      %v2014 = vpack.c.b16 %v1276, %v1274
      %v2015 = vpack.c.b16 %v1279, %v1277
      %v2016 = vpack.c.b16 %v1280, %v1278
      %v2017 = vpack.c.b16 %v1283, %v1281
      %v2018 = vpack.c.b16 %v1284, %v1282
      %v2019 = vpack.c.b16 %v1287, %v1285
      %v2020 = vpack.c.b16 %v1288, %v1286
      %v2021 = vpack.c.b16 %v1291, %v1289
      %v2022 = vpack.c.b16 %v1292, %v1290
      %v2023 = vpack.c.b16 %v1295, %v1293
      %v2024 = vpack.c.b16 %v1296, %v1294
      %v2025 = vpack.c.b16 %v1299, %v1297
      %v2026 = vpack.c.b16 %v1300, %v1298
      %v2027 = vpack.c.b16 %v1303, %v1301
      %v2028 = vpack.c.b16 %v1304, %v1302
      %v2029 = vpack.c.b16 %v1307, %v1305
      %v2030 = vpack.c.b16 %v1308, %v1306
      %v2031 = vpack.c.b16 %v1311, %v1309
      %v2032 = vpack.c.b16 %v1312, %v1310
      %v2033 = vpack.c.b16 %v1315, %v1313
      %v2034 = vpack.c.b16 %v1316, %v1314
      %v2035 = vpack.c.b16 %v1319, %v1317
      %v2036 = vpack.c.b16 %v1320, %v1318
      %v2037 = vpack.c.b16 %v1323, %v1321
      %v2038 = vpack.c.b16 %v1324, %v1322
      %v2039 = vpack.c.b16 %v1327, %v1325
      %v2040 = vpack.c.b16 %v1328, %v1326
      %v2041 = vpack.c.b16 %v1331, %v1329
      %v2042 = vpack.c.b16 %v1332, %v1330
      %v2043 = vpack.c.b16 %v1335, %v1333
      %v2044 = vpack.c.b16 %v1336, %v1334
      %v2045 = vpack.c.b16 %v1339, %v1337
      %v2046 = vpack.c.b16 %v1340, %v1338
      %v2047 = vpack.c.b16 %v1343, %v1341
      %v2048 = vpack.c.b16 %v1344, %v1342
      %v2049 = vpack.c.b16 %v1347, %v1345
      %v2050 = vpack.c.b16 %v1348, %v1346
      %v2051 = vpack.c.b16 %v1351, %v1349
      %v2052 = vpack.c.b16 %v1352, %v1350
      %v2053 = vpack.c.b16 %v1355, %v1353
      %v2054 = vpack.c.b16 %v1356, %v1354
      %v2055 = vpack.c.b16 %v1359, %v1357
      %v2056 = vpack.c.b16 %v1360, %v1358
      %v2057 = vpack.c.b16 %v1363, %v1361
      %v2058 = vpack.c.b16 %v1364, %v1362
      %v2059 = vpack.c.b16 %v1367, %v1365
      %v2060 = vpack.c.b16 %v1368, %v1366
      %v2061 = vpack.c.b16 %v1371, %v1369
      %v2062 = vpack.c.b16 %v1372, %v1370
      %v2063 = vpack.c.b16 %v1375, %v1373
      %v2064 = vpack.c.b16 %v1376, %v1374
      %v2065 = vpack.c.b16 %v1379, %v1377
      %v2066 = vpack.c.b16 %v1380, %v1378
      %v2067 = vpack.c.b16 %v1383, %v1381
      %v2068 = vpack.c.b16 %v1384, %v1382
      %v2069 = vpack.c.b16 %v1387, %v1385
      %v2070 = vpack.c.b16 %v1388, %v1386
      %v2071 = vpack.c.b16 %v1391, %v1389
      %v2072 = vpack.c.b16 %v1392, %v1390
      %v2073 = vpack.c.b16 %v1395, %v1393
      %v2074 = vpack.c.b16 %v1396, %v1394
      %v2075 = vpack.c.b16 %v1399, %v1397
      %v2076 = vpack.c.b16 %v1400, %v1398
      %v2077 = vpack.c.b16 %v1403, %v1401
      %v2078 = vpack.c.b16 %v1404, %v1402
      %v2079 = vpack.c.b16 %v1407, %v1405
      %v2080 = vpack.c.b16 %v1408, %v1406
      %v2081 = vpack.c.b16 %v1411, %v1409
      %v2082 = vpack.c.b16 %v1412, %v1410
      %v2083 = vpack.c.b16 %v1415, %v1413
      %v2084 = vpack.c.b16 %v1416, %v1414
      %v2085 = vpack.c.b16 %v1419, %v1417
      %v2086 = vpack.c.b16 %v1420, %v1418
      %v2087 = vpack.c.b16 %v1423, %v1421
      %v2088 = vpack.c.b16 %v1424, %v1422
      %v2089 = vpack.c.b16 %v1427, %v1425
      %v2090 = vpack.c.b16 %v1428, %v1426
      %v2091 = vpack.c.b16 %v1431, %v1429
      %v2092 = vpack.c.b16 %v1432, %v1430
      %v2093 = vpack.c.b16 %v1435, %v1433
      %v2094 = vpack.c.b16 %v1436, %v1434
      %v2095 = vpack.c.b16 %v1439, %v1437
      %v2096 = vpack.c.b16 %v1440, %v1438
      %v2097 = vpack.c.b16 %v1443, %v1441
      %v2098 = vpack.c.b16 %v1444, %v1442
      %v2099 = vpack.c.b16 %v1447, %v1445
      %v2100 = vpack.c.b16 %v1448, %v1446
      %v2101 = vpack.c.b16 %v1451, %v1449
      %v2102 = vpack.c.b16 %v1452, %v1450
      %v2103 = vpack.c.b16 %v1455, %v1453
      %v2104 = vpack.c.b16 %v1456, %v1454
      %v2105 = vpack.c.b16 %v1459, %v1457
      %v2106 = vpack.c.b16 %v1460, %v1458
      %v2107 = vpack.c.b16 %v1463, %v1461
      %v2108 = vpack.c.b16 %v1464, %v1462
      %v2109 = vpack.c.b16 %v1467, %v1465
      %v2110 = vpack.c.b16 %v1468, %v1466
      %v2111 = vpack.c.b16 %v1471, %v1469
      %v2112 = vpack.c.b16 %v1472, %v1470
      %v2113 = vpack.c.b16 %v1475, %v1473
      %v2114 = vpack.c.b16 %v1476, %v1474
      %v2115 = vpack.c.b16 %v1479, %v1477
      %v2116 = vpack.c.b16 %v1480, %v1478
      %v2117 = vpack.c.b16 %v1483, %v1481
      %v2118 = vpack.c.b16 %v1484, %v1482
      %v2119 = vpack.c.b16 %v1487, %v1485
      %v2120 = vpack.c.b16 %v1488, %v1486
      %v2121 = vpack.c.b16 %v1491, %v1489
      %v2122 = vpack.c.b16 %v1492, %v1490
      %v2123 = vpack.c.b16 %v1495, %v1493
      %v2124 = vpack.c.b16 %v1496, %v1494
      %v2125 = vpack.c.b16 %v1499, %v1497
      %v2126 = vpack.c.b16 %v1500, %v1498
      %v2127 = vpack.c.b16 %v1503, %v1501
      %v2128 = vpack.c.b16 %v1504, %v1502
      %v2129 = vpack.c.b16 %v1507, %v1505
      %v2130 = vpack.c.b16 %v1508, %v1506
      %v2131 = vpack.c.b16 %v1511, %v1509
      %v2132 = vpack.c.b16 %v1512, %v1510
      %v2133 = vpack.c.b16 %v1515, %v1513
      %v2134 = vpack.c.b16 %v1516, %v1514
      %v2135 = vpack.c.b16 %v1519, %v1517
      %v2136 = vpack.c.b16 %v1520, %v1518
      %v2137 = vpack.c.b16 %v1523, %v1521
      %v2138 = vpack.c.b16 %v1524, %v1522
      %v2139 = vpack.c.b16 %v1527, %v1525
      %v2140 = vpack.c.b16 %v1528, %v1526
      %v2141 = vpack.c.b16 %v1531, %v1529
      %v2142 = vpack.c.b16 %v1532, %v1530
      %v2143 = vpack.c.b16 %v1535, %v1533
      %v2144 = vpack.c.b16 %v1536, %v1534
      %v2145 = vpack.c.b16 %v1539, %v1537
      %v2146 = vpack.c.b16 %v1540, %v1538
      %v2147 = vpack.c.b16 %v1543, %v1541
      %v2148 = vpack.c.b16 %v1544, %v1542
      %v2149 = vpack.c.b16 %v1547, %v1545
      %v2150 = vpack.c.b16 %v1548, %v1546
      %v2151 = vpack.c.b16 %v1551, %v1549
      %v2152 = vpack.c.b16 %v1552, %v1550
      %v2153 = vpack.c.b16 %v1555, %v1553
      %v2154 = vpack.c.b16 %v1556, %v1554
      %v2155 = vpack.c.b16 %v1559, %v1557
      %v2156 = vpack.c.b16 %v1560, %v1558
      %v2157 = vpack.c.b16 %v1563, %v1561
      %v2158 = vpack.c.b16 %v1564, %v1562
      %v2159 = vpack.c.b16 %v1567, %v1565
      %v2160 = vpack.c.b16 %v1568, %v1566
      %v2161 = vpack.c.b16 %v1571, %v1569
      %v2162 = vpack.c.b16 %v1572, %v1570
      %v2163 = vpack.c.b16 %v1575, %v1573
      %v2164 = vpack.c.b16 %v1576, %v1574
      %v2165 = vpack.c.b16 %v1579, %v1577
      %v2166 = vpack.c.b16 %v1580, %v1578
      %v2167 = vpack.c.b16 %v1583, %v1581
      %v2168 = vpack.c.b16 %v1584, %v1582
      %v2169 = vpack.c.b16 %v1587, %v1585
      %v2170 = vpack.c.b16 %v1588, %v1586
      %v2171 = vpack.c.b16 %v1591, %v1589
      %v2172 = vpack.c.b16 %v1592, %v1590
      %v2173 = vpack.c.b16 %v1595, %v1593
      %v2174 = vpack.c.b16 %v1596, %v1594
      %v2175 = vpack.c.b16 %v1599, %v1597
      %v2176 = vpack.c.b16 %v1600, %v1598
      %v2177 = vpack.c.b16 %v1603, %v1601
      %v2178 = vpack.c.b16 %v1604, %v1602
      %v2179 = vpack.c.b16 %v1607, %v1605
      %v2180 = vpack.c.b16 %v1608, %v1606
      %v2181 = vpack.c.b16 %v1611, %v1609
      %v2182 = vpack.c.b16 %v1612, %v1610
      %v2183 = vpack.c.b16 %v1615, %v1613
      %v2184 = vpack.c.b16 %v1616, %v1614
      %v2185 = vpack.c.b16 %v1619, %v1617
      %v2186 = vpack.c.b16 %v1620, %v1618
      %v2187 = vpack.c.b16 %v1623, %v1621
      %v2188 = vpack.c.b16 %v1624, %v1622
      %v2189 = vpack.c.b16 %v1627, %v1625
      %v2190 = vpack.c.b16 %v1628, %v1626
      %v2191 = vpack.c.b16 %v1631, %v1629
      %v2192 = vpack.c.b16 %v1632, %v1630
      %v2193 = vpack.c.b16 %v1635, %v1633
      %v2194 = vpack.c.b16 %v1636, %v1634
      %v2195 = vpack.c.b16 %v1639, %v1637
      %v2196 = vpack.c.b16 %v1640, %v1638
      %v2197 = vpack.c.b16 %v1643, %v1641
      %v2198 = vpack.c.b16 %v1644, %v1642
      %v2199 = vpack.c.b16 %v1647, %v1645
      %v2200 = vpack.c.b16 %v1648, %v1646
      %v2201 = vpack.c.b16 %v1651, %v1649
      %v2202 = vpack.c.b16 %v1652, %v1650
      %v2203 = vpack.c.b16 %v1655, %v1653
      %v2204 = vpack.c.b16 %v1656, %v1654
      %v2205 = vpack.c.b16 %v1659, %v1657
      %v2206 = vpack.c.b16 %v1660, %v1658
      %v2207 = vpack.c.b16 %v1663, %v1661
      %v2208 = vpack.c.b16 %v1664, %v1662
      %v2209 = vpack.c.b16 %v1667, %v1665
      %v2210 = vpack.c.b16 %v1668, %v1666
      %v2211 = vpack.c.b16 %v1671, %v1669
      %v2212 = vpack.c.b16 %v1672, %v1670
      %v2213 = vpack.c.b16 %v1675, %v1673
      %v2214 = vpack.c.b16 %v1676, %v1674
      %v2215 = vpack.c.b16 %v1679, %v1677
      %v2216 = vpack.c.b16 %v1680, %v1678
      %v2217 = vpack.c.b16 %v1683, %v1681
      %v2218 = vpack.c.b16 %v1684, %v1682
      %v2219 = vpack.c.b16 %v1687, %v1685
      %v2220 = vpack.c.b16 %v1688, %v1686
      %v2221 = vpack.c.b16 %v1691, %v1689
      %v2222 = vpack.c.b16 %v1692, %v1690
      %v2223 = vpack.c.b16 %v1695, %v1693
      %v2224 = vpack.c.b16 %v1696, %v1694
      %v2225 = vpack.c.b16 %v1699, %v1697
      %v2226 = vpack.c.b16 %v1700, %v1698
      %v2227 = vpack.c.b16 %v1703, %v1701
      %v2228 = vpack.c.b16 %v1704, %v1702
      %v2229 = vpack.c.b16 %v1707, %v1705
      %v2230 = vpack.c.b16 %v1708, %v1706
      %v2231 = vpack.c.b16 %v1711, %v1709
      %v2232 = vpack.c.b16 %v1712, %v1710
      %v2233 = vpack.c.b16 %v1715, %v1713
      %v2234 = vpack.c.b16 %v1716, %v1714
      %v2235 = vpack.c.b16 %v1719, %v1717
      %v2236 = vpack.c.b16 %v1720, %v1718
      %v2237 = vpack.c.b16 %v1723, %v1721
      %v2238 = vpack.c.b16 %v1724, %v1722
      %v2239 = vpack.c.b16 %v1727, %v1725
      %v2240 = vpack.c.b16 %v1728, %v1726
      %v2241 = vpack.c.b16 %v1731, %v1729
      %v2242 = vpack.c.b16 %v1732, %v1730
      %v2243 = vpack.c.b16 %v1735, %v1733
      %v2244 = vpack.c.b16 %v1736, %v1734
      %v2245 = vpack.c.b16 %v1739, %v1737
      %v2246 = vpack.c.b16 %v1740, %v1738
      %v2247 = vpack.c.b16 %v1743, %v1741
      %v2248 = vpack.c.b16 %v1744, %v1742
      %v2249 = vpack.c.b16 %v1747, %v1745
      %v2250 = vpack.c.b16 %v1748, %v1746
      %v2251 = vpack.c.b16 %v1751, %v1749
      %v2252 = vpack.c.b16 %v1752, %v1750
      %v2253 = vpack.c.b16 %v1755, %v1753
      %v2254 = vpack.c.b16 %v1756, %v1754
      %v2255 = vpack.c.b16 %v1759, %v1757
      %v2256 = vpack.c.b16 %v1760, %v1758
      %v2257 = vpack.c.b16 %v1763, %v1761
      %v2258 = vpack.c.b16 %v1764, %v1762
      %v2259 = vpack.c.b16 %v1767, %v1765
      %v2260 = vpack.c.b16 %v1768, %v1766
      %v2261 = vpack.c.b16 %v1771, %v1769
      %v2262 = vpack.c.b16 %v1772, %v1770
      %v2263 = vpack.c.b16 %v1775, %v1773
      %v2264 = vpack.c.b16 %v1776, %v1774
      %v2265 = vpack.c.b16 %v1779, %v1777
      %v2266 = vpack.c.b16 %v1780, %v1778
      %v2267 = vpack.c.b16 %v1783, %v1781
      %v2268 = vpack.c.b16 %v1784, %v1782
      %v2269 = vpack.c.b16 %v1787, %v1785
      %v2270 = vpack.c.b16 %v1788, %v1786
      %v2271 = vpack.c.b16 %v1791, %v1789
      %v2272 = vpack.c.b16 %v1792, %v1790
      %v2273 = vpack.c.b16 %v1795, %v1793
      %v2274 = vpack.c.b16 %v1796, %v1794
      %v2275 = vpack.c.b16 %v1799, %v1797
      %v2276 = vpack.c.b16 %v1800, %v1798
      %v2277 = vpack.c.b16 %v1803, %v1801
      %v2278 = vpack.c.b16 %v1804, %v1802
      %v2279 = vpack.c.b16 %v1807, %v1805
      %v2280 = vpack.c.b16 %v1808, %v1806
      %v2281 = vpack.c.b16 %v1811, %v1809
      %v2282 = vpack.c.b16 %v1812, %v1810
      %v2283 = vpack.c.b16 %v1815, %v1813
      %v2284 = vpack.c.b16 %v1816, %v1814
      %v2285 = vpack.c.b16 %v1819, %v1817
      %v2286 = vpack.c.b16 %v1820, %v1818
      %v2287 = vpack.c.b16 %v1823, %v1821
      %v2288 = vpack.c.b16 %v1824, %v1822
      %v2289 = vpack.c.b16 %v1827, %v1825
      %v2290 = vpack.c.b16 %v1828, %v1826
      %v2291 = vpack.c.b16 %v1831, %v1829
      %v2292 = vpack.c.b16 %v1832, %v1830
      %v2293 = vpack.c.b16 %v1835, %v1833
      %v2294 = vpack.c.b16 %v1836, %v1834
      %v2295 = vpack.c.b16 %v1839, %v1837
      %v2296 = vpack.c.b16 %v1840, %v1838
      %v2297 = vpack.c.b16 %v1843, %v1841
      %v2298 = vpack.c.b16 %v1844, %v1842
      %v2299 = vpack.c.b16 %v1847, %v1845
      %v2300 = vpack.c.b16 %v1848, %v1846
      %v2301 = vpack.c.b16 %v1851, %v1849
      %v2302 = vpack.c.b16 %v1852, %v1850
      %v2303 = vpack.c.b16 %v1855, %v1853
      %v2304 = vpack.c.b16 %v1856, %v1854
      %v2305 = vpack.c.b16 %v1859, %v1857
      %v2306 = vpack.c.b16 %v1860, %v1858
      %v2307 = vpack.c.b16 %v1863, %v1861
      %v2308 = vpack.c.b16 %v1864, %v1862
      %v2309 = vpack.c.b16 %v1867, %v1865
      %v2310 = vpack.c.b16 %v1868, %v1866
      %v2311 = vpack.c.b16 %v1871, %v1869
      %v2312 = vpack.c.b16 %v1872, %v1870
      %v2313 = vpack.c.b16 %v1875, %v1873
      %v2314 = vpack.c.b16 %v1876, %v1874
      %v2315 = vpack.c.b16 %v1879, %v1877
      %v2316 = vpack.c.b16 %v1880, %v1878
      %v2317 = vpack.c.b16 %v1883, %v1881
      %v2318 = vpack.c.b16 %v1884, %v1882
      %v2319 = vpack.c.b16 %v1887, %v1885
      %v2320 = vpack.c.b16 %v1888, %v1886
      %v2321 = vpack.c.b16 %v1891, %v1889
      %v2322 = vpack.c.b16 %v1892, %v1890
      %v2323 = vpack.c.b16 %v1895, %v1893
      %v2324 = vpack.c.b16 %v1896, %v1894
      %v2325 = vpack.c.b16 %v1899, %v1897
      %v2326 = vpack.c.b16 %v1900, %v1898
      %v2327 = vpack.c.b16 %v1903, %v1901
      %v2328 = vpack.c.b16 %v1904, %v1902
      %v2329 = vpack.c.b16 %v1907, %v1905
      %v2330 = vpack.c.b16 %v1908, %v1906
      %v2331 = vpack.c.b16 %v1911, %v1909
      %v2332 = vpack.c.b16 %v1912, %v1910
      %v2333 = vpack.c.b16 %v1915, %v1913
      %v2334 = vpack.c.b16 %v1916, %v1914
      %v2335 = vpack.c.b16 %v1919, %v1917
      %v2336 = vpack.c.b16 %v1920, %v1918
      %v2337 = vpack.c.b16 %v1923, %v1921
      %v2338 = vpack.c.b16 %v1924, %v1922
      %v2339 = vpack.c.b16 %v1927, %v1925
      %v2340 = vpack.c.b16 %v1928, %v1926
      %v2341 = vpack.c.b16 %v1931, %v1929
      %v2342 = vpack.c.b16 %v1932, %v1930
      %v2343 = vpack.c.b16 %v1935, %v1933
      %v2344 = vpack.c.b16 %v1936, %v1934
      %v2345 = vpack.c.b16 %v1939, %v1937
      %v2346 = vpack.c.b16 %v1940, %v1938
      %v2347 = vpack.c.b16 %v1943, %v1941
      %v2348 = vpack.c.b16 %v1944, %v1942
      %v2349 = vpack.c.b16 %v1947, %v1945
      %v2350 = vpack.c.b16 %v1948, %v1946
      %v2351 = vpack.c.b16 %v1951, %v1949
      %v2352 = vpack.c.b16 %v1952, %v1950
      %2753 = vmatpush.bf16.msra.mxu0 %v1967
      %2754 = vmatpush.bf16.msra.mxu0 %v1965
      %2755 = vmatpush.bf16.msra.mxu0 %v1963
      %2756 = vmatpush.bf16.msra.mxu0 %v1961
      %2757 = vmatpush.bf16.msra.mxu0 %v1959
      %2758 = vmatpush.bf16.msra.mxu0 %v1957
      %2759 = vmatpush.bf16.msra.mxu0 %v1955
      %2760 = vmatpush.bf16.msra.mxu0 %v1953
      %2761 = vmatmul.bf16.gmra.mxu0 %v703
      %v2762 = vpop.f32.mrf.mxu0
      %v2763 = vadd.f32 0.0, %v2762
      %v2764 = vpop.f32.mrf.mxu0
      %2765 = vdwg.mxu0
      %2766 = vmatpush.bf16.msra.mxu0 %v1983
      %2767 = vmatpush.bf16.msra.mxu0 %v1981
      %2768 = vmatpush.bf16.msra.mxu0 %v1979
      %2769 = vmatpush.bf16.msra.mxu0 %v1977
      %2770 = vmatpush.bf16.msra.mxu0 %v1975
      %2771 = vmatpush.bf16.msra.mxu0 %v1973
      %2772 = vmatpush.bf16.msra.mxu0 %v1971
      %2773 = vmatpush.bf16.msra.mxu0 %v1969
      %2774 = vmatmul.bf16.gmra.mxu0 %v704
      %v2775 = vpop.f32.mrf.mxu0
      %v2776 = vadd.f32 %v2763, %v2775
      %v2777 = vpop.f32.mrf.mxu0
      %2778 = vdwg.mxu0
      %2779 = vmatpush.bf16.msra.mxu0 %v1999
      %2780 = vmatpush.bf16.msra.mxu0 %v1997
      %2781 = vmatpush.bf16.msra.mxu0 %v1995
      %2782 = vmatpush.bf16.msra.mxu0 %v1993
      %2783 = vmatpush.bf16.msra.mxu0 %v1991
      %2784 = vmatpush.bf16.msra.mxu0 %v1989
      %2785 = vmatpush.bf16.msra.mxu0 %v1987
      %2786 = vmatpush.bf16.msra.mxu0 %v1985
      %2787 = vmatmul.bf16.gmra.mxu0 %v705
      %v2788 = vpop.f32.mrf.mxu0
      %v2789 = vadd.f32 %v2776, %v2788
      %v2790 = vpop.f32.mrf.mxu0
      %2791 = vdwg.mxu0
      %2792 = vmatpush.bf16.msra.mxu0 %v2015
      %2793 = vmatpush.bf16.msra.mxu0 %v2013
      %2794 = vmatpush.bf16.msra.mxu0 %v2011
      %2795 = vmatpush.bf16.msra.mxu0 %v2009
      %2796 = vmatpush.bf16.msra.mxu0 %v2007
      %2797 = vmatpush.bf16.msra.mxu0 %v2005
      %2798 = vmatpush.bf16.msra.mxu0 %v2003
      %2799 = vmatpush.bf16.msra.mxu0 %v2001
      %2800 = vmatmul.bf16.gmra.mxu0 %v706
      %v2801 = vpop.f32.mrf.mxu0
      %v2802 = vadd.f32 %v2789, %v2801
      %v2803 = vpop.f32.mrf.mxu0
      %2804 = vdwg.mxu0
      %2805 = vmatpush.bf16.msra.mxu0 %v2031
      %2806 = vmatpush.bf16.msra.mxu0 %v2029
      %2807 = vmatpush.bf16.msra.mxu0 %v2027
      %2808 = vmatpush.bf16.msra.mxu0 %v2025
      %2809 = vmatpush.bf16.msra.mxu0 %v2023
      %2810 = vmatpush.bf16.msra.mxu0 %v2021
      %2811 = vmatpush.bf16.msra.mxu0 %v2019
      %2812 = vmatpush.bf16.msra.mxu0 %v2017
      %2813 = vmatmul.bf16.gmra.mxu0 %v707
      %v2814 = vpop.f32.mrf.mxu0
      %v2815 = vadd.f32 %v2802, %v2814
      %v2816 = vpop.f32.mrf.mxu0
      %2817 = vdwg.mxu0
      %2818 = vmatpush.bf16.msra.mxu0 %v2047
      %2819 = vmatpush.bf16.msra.mxu0 %v2045
      %2820 = vmatpush.bf16.msra.mxu0 %v2043
      %2821 = vmatpush.bf16.msra.mxu0 %v2041
      %2822 = vmatpush.bf16.msra.mxu0 %v2039
      %2823 = vmatpush.bf16.msra.mxu0 %v2037
      %2824 = vmatpush.bf16.msra.mxu0 %v2035
      %2825 = vmatpush.bf16.msra.mxu0 %v2033
      %2826 = vmatmul.bf16.gmra.mxu0 %v708
      %v2827 = vpop.f32.mrf.mxu0
      %v2828 = vadd.f32 %v2815, %v2827
      %v2829 = vpop.f32.mrf.mxu0
      %2830 = vdwg.mxu0
      %2831 = vmatpush.bf16.msra.mxu0 %v2063
      %2832 = vmatpush.bf16.msra.mxu0 %v2061
      %2833 = vmatpush.bf16.msra.mxu0 %v2059
      %2834 = vmatpush.bf16.msra.mxu0 %v2057
      %2835 = vmatpush.bf16.msra.mxu0 %v2055
      %2836 = vmatpush.bf16.msra.mxu0 %v2053
      %2837 = vmatpush.bf16.msra.mxu0 %v2051
      %2838 = vmatpush.bf16.msra.mxu0 %v2049
      %2839 = vmatmul.bf16.gmra.mxu0 %v709
      %v2840 = vpop.f32.mrf.mxu0
      %v2841 = vadd.f32 %v2828, %v2840
      %v2842 = vpop.f32.mrf.mxu0
      %2843 = vdwg.mxu0
      %2844 = vmatpush.bf16.msra.mxu0 %v2079
      %2845 = vmatpush.bf16.msra.mxu0 %v2077
      %2846 = vmatpush.bf16.msra.mxu0 %v2075
      %2847 = vmatpush.bf16.msra.mxu0 %v2073
      %2848 = vmatpush.bf16.msra.mxu0 %v2071
      %2849 = vmatpush.bf16.msra.mxu0 %v2069
      %2850 = vmatpush.bf16.msra.mxu0 %v2067
      %2851 = vmatpush.bf16.msra.mxu0 %v2065
      %2852 = vmatmul.bf16.gmra.mxu0 %v710
      %v2853 = vpop.f32.mrf.mxu0
      %v2854 = vadd.f32 %v2841, %v2853
      %v2855 = vpop.f32.mrf.mxu0
      %2856 = vdwg.mxu0
      %2857 = vmatpush.bf16.msra.mxu0 %v2095
      %2858 = vmatpush.bf16.msra.mxu0 %v2093
      %2859 = vmatpush.bf16.msra.mxu0 %v2091
      %2860 = vmatpush.bf16.msra.mxu0 %v2089
      %2861 = vmatpush.bf16.msra.mxu0 %v2087
      %2862 = vmatpush.bf16.msra.mxu0 %v2085
      %2863 = vmatpush.bf16.msra.mxu0 %v2083
      %2864 = vmatpush.bf16.msra.mxu0 %v2081
      %2865 = vmatmul.bf16.gmra.mxu0 %v711
      %v2866 = vpop.f32.mrf.mxu0
      %v2867 = vadd.f32 %v2854, %v2866
      %v2868 = vpop.f32.mrf.mxu0
      %2869 = vdwg.mxu0
      %2870 = vmatpush.bf16.msra.mxu0 %v2111
      %2871 = vmatpush.bf16.msra.mxu0 %v2109
      %2872 = vmatpush.bf16.msra.mxu0 %v2107
      %2873 = vmatpush.bf16.msra.mxu0 %v2105
      %2874 = vmatpush.bf16.msra.mxu0 %v2103
      %2875 = vmatpush.bf16.msra.mxu0 %v2101
      %2876 = vmatpush.bf16.msra.mxu0 %v2099
      %2877 = vmatpush.bf16.msra.mxu0 %v2097
      %2878 = vmatmul.bf16.gmra.mxu0 %v712
      %v2879 = vpop.f32.mrf.mxu0
      %v2880 = vadd.f32 %v2867, %v2879
      %v2881 = vpop.f32.mrf.mxu0
      %2882 = vdwg.mxu0
      %2883 = vmatpush.bf16.msra.mxu0 %v2127
      %2884 = vmatpush.bf16.msra.mxu0 %v2125
      %2885 = vmatpush.bf16.msra.mxu0 %v2123
      %2886 = vmatpush.bf16.msra.mxu0 %v2121
      %2887 = vmatpush.bf16.msra.mxu0 %v2119
      %2888 = vmatpush.bf16.msra.mxu0 %v2117
      %2889 = vmatpush.bf16.msra.mxu0 %v2115
      %2890 = vmatpush.bf16.msra.mxu0 %v2113
      %2891 = vmatmul.bf16.gmra.mxu0 %v713
      %v2892 = vpop.f32.mrf.mxu0
      %v2893 = vadd.f32 %v2880, %v2892
      %v2894 = vpop.f32.mrf.mxu0
      %2895 = vdwg.mxu0
      %2896 = vmatpush.bf16.msra.mxu0 %v2143
      %2897 = vmatpush.bf16.msra.mxu0 %v2141
      %2898 = vmatpush.bf16.msra.mxu0 %v2139
      %2899 = vmatpush.bf16.msra.mxu0 %v2137
      %2900 = vmatpush.bf16.msra.mxu0 %v2135
      %2901 = vmatpush.bf16.msra.mxu0 %v2133
      %2902 = vmatpush.bf16.msra.mxu0 %v2131
      %2903 = vmatpush.bf16.msra.mxu0 %v2129
      %2904 = vmatmul.bf16.gmra.mxu0 %v714
      %v2905 = vpop.f32.mrf.mxu0
      %v2906 = vadd.f32 %v2893, %v2905
      %v2907 = vpop.f32.mrf.mxu0
      %2908 = vdwg.mxu0
      %2909 = vmatpush.bf16.msra.mxu0 %v2159
      %2910 = vmatpush.bf16.msra.mxu0 %v2157
      %2911 = vmatpush.bf16.msra.mxu0 %v2155
      %2912 = vmatpush.bf16.msra.mxu0 %v2153
      %2913 = vmatpush.bf16.msra.mxu0 %v2151
      %2914 = vmatpush.bf16.msra.mxu0 %v2149
      %2915 = vmatpush.bf16.msra.mxu0 %v2147
      %2916 = vmatpush.bf16.msra.mxu0 %v2145
      %2917 = vmatmul.bf16.gmra.mxu0 %v715
      %v2918 = vpop.f32.mrf.mxu0
      %v2919 = vadd.f32 %v2906, %v2918
      %v2920 = vpop.f32.mrf.mxu0
      %2921 = vdwg.mxu0
      %2922 = vmatpush.bf16.msra.mxu0 %v2175
      %2923 = vmatpush.bf16.msra.mxu0 %v2173
      %2924 = vmatpush.bf16.msra.mxu0 %v2171
      %2925 = vmatpush.bf16.msra.mxu0 %v2169
      %2926 = vmatpush.bf16.msra.mxu0 %v2167
      %2927 = vmatpush.bf16.msra.mxu0 %v2165
      %2928 = vmatpush.bf16.msra.mxu0 %v2163
      %2929 = vmatpush.bf16.msra.mxu0 %v2161
      %2930 = vmatmul.bf16.gmra.mxu0 %v716
      %v2931 = vpop.f32.mrf.mxu0
      %v2932 = vadd.f32 %v2919, %v2931
      %v2933 = vpop.f32.mrf.mxu0
      %2934 = vdwg.mxu0
      %2935 = vmatpush.bf16.msra.mxu0 %v2191
      %2936 = vmatpush.bf16.msra.mxu0 %v2189
      %2937 = vmatpush.bf16.msra.mxu0 %v2187
      %2938 = vmatpush.bf16.msra.mxu0 %v2185
      %2939 = vmatpush.bf16.msra.mxu0 %v2183
      %2940 = vmatpush.bf16.msra.mxu0 %v2181
      %2941 = vmatpush.bf16.msra.mxu0 %v2179
      %2942 = vmatpush.bf16.msra.mxu0 %v2177
      %2943 = vmatmul.bf16.gmra.mxu0 %v717
      %v2944 = vpop.f32.mrf.mxu0
      %v2945 = vadd.f32 %v2932, %v2944
      %v2946 = vpop.f32.mrf.mxu0
      %2947 = vdwg.mxu0
      %2948 = vmatpush.bf16.msra.mxu0 %v2207
      %2949 = vmatpush.bf16.msra.mxu0 %v2205
      %2950 = vmatpush.bf16.msra.mxu0 %v2203
      %2951 = vmatpush.bf16.msra.mxu0 %v2201
      %2952 = vmatpush.bf16.msra.mxu0 %v2199
      %2953 = vmatpush.bf16.msra.mxu0 %v2197
      %2954 = vmatpush.bf16.msra.mxu0 %v2195
      %2955 = vmatpush.bf16.msra.mxu0 %v2193
      %2956 = vmatmul.bf16.gmra.mxu0 %v718
      %v2957 = vpop.f32.mrf.mxu0
      %v2958 = vadd.f32 %v2945, %v2957
      %v2959 = vpop.f32.mrf.mxu0
      %2960 = vdwg.mxu0
      %2961 = vmatpush.bf16.msra.mxu0 %v2223
      %2962 = vmatpush.bf16.msra.mxu0 %v2221
      %2963 = vmatpush.bf16.msra.mxu0 %v2219
      %2964 = vmatpush.bf16.msra.mxu0 %v2217
      %2965 = vmatpush.bf16.msra.mxu0 %v2215
      %2966 = vmatpush.bf16.msra.mxu0 %v2213
      %2967 = vmatpush.bf16.msra.mxu0 %v2211
      %2968 = vmatpush.bf16.msra.mxu0 %v2209
      %2969 = vmatmul.bf16.gmra.mxu0 %v719
      %v2970 = vpop.f32.mrf.mxu0
      %v2971 = vadd.f32 %v2958, %v2970
      %v2972 = vpop.f32.mrf.mxu0
      %2973 = vdwg.mxu0
      %2974 = vmatpush.bf16.msra.mxu0 %v2239
      %2975 = vmatpush.bf16.msra.mxu0 %v2237
      %2976 = vmatpush.bf16.msra.mxu0 %v2235
      %2977 = vmatpush.bf16.msra.mxu0 %v2233
      %2978 = vmatpush.bf16.msra.mxu0 %v2231
      %2979 = vmatpush.bf16.msra.mxu0 %v2229
      %2980 = vmatpush.bf16.msra.mxu0 %v2227
      %2981 = vmatpush.bf16.msra.mxu0 %v2225
      %2982 = vmatmul.bf16.gmra.mxu0 %v720
      %v2983 = vpop.f32.mrf.mxu0
      %v2984 = vadd.f32 %v2971, %v2983
      %v2985 = vpop.f32.mrf.mxu0
      %2986 = vdwg.mxu0
      %2987 = vmatpush.bf16.msra.mxu0 %v2255
      %2988 = vmatpush.bf16.msra.mxu0 %v2253
      %2989 = vmatpush.bf16.msra.mxu0 %v2251
      %2990 = vmatpush.bf16.msra.mxu0 %v2249
      %2991 = vmatpush.bf16.msra.mxu0 %v2247
      %2992 = vmatpush.bf16.msra.mxu0 %v2245
      %2993 = vmatpush.bf16.msra.mxu0 %v2243
      %2994 = vmatpush.bf16.msra.mxu0 %v2241
      %2995 = vmatmul.bf16.gmra.mxu0 %v721
      %v2996 = vpop.f32.mrf.mxu0
      %v2997 = vadd.f32 %v2984, %v2996
      %v2998 = vpop.f32.mrf.mxu0
      %2999 = vdwg.mxu0
      %3000 = vmatpush.bf16.msra.mxu0 %v2271
      %3001 = vmatpush.bf16.msra.mxu0 %v2269
      %3002 = vmatpush.bf16.msra.mxu0 %v2267
      %3003 = vmatpush.bf16.msra.mxu0 %v2265
      %3004 = vmatpush.bf16.msra.mxu0 %v2263
      %3005 = vmatpush.bf16.msra.mxu0 %v2261
      %3006 = vmatpush.bf16.msra.mxu0 %v2259
      %3007 = vmatpush.bf16.msra.mxu0 %v2257
      %3008 = vmatmul.bf16.gmra.mxu0 %v722
      %v3009 = vpop.f32.mrf.mxu0
      %v3010 = vadd.f32 %v2997, %v3009
      %v3011 = vpop.f32.mrf.mxu0
      %3012 = vdwg.mxu0
      %3013 = vmatpush.bf16.msra.mxu0 %v2287
      %3014 = vmatpush.bf16.msra.mxu0 %v2285
      %3015 = vmatpush.bf16.msra.mxu0 %v2283
      %3016 = vmatpush.bf16.msra.mxu0 %v2281
      %3017 = vmatpush.bf16.msra.mxu0 %v2279
      %3018 = vmatpush.bf16.msra.mxu0 %v2277
      %3019 = vmatpush.bf16.msra.mxu0 %v2275
      %3020 = vmatpush.bf16.msra.mxu0 %v2273
      %3021 = vmatmul.bf16.gmra.mxu0 %v723
      %v3022 = vpop.f32.mrf.mxu0
      %v3023 = vadd.f32 %v3010, %v3022
      %v3024 = vpop.f32.mrf.mxu0
      %3025 = vdwg.mxu0
      %3026 = vmatpush.bf16.msra.mxu0 %v2303
      %3027 = vmatpush.bf16.msra.mxu0 %v2301
      %3028 = vmatpush.bf16.msra.mxu0 %v2299
      %3029 = vmatpush.bf16.msra.mxu0 %v2297
      %3030 = vmatpush.bf16.msra.mxu0 %v2295
      %3031 = vmatpush.bf16.msra.mxu0 %v2293
      %3032 = vmatpush.bf16.msra.mxu0 %v2291
      %3033 = vmatpush.bf16.msra.mxu0 %v2289
      %3034 = vmatmul.bf16.gmra.mxu0 %v724
      %v3035 = vpop.f32.mrf.mxu0
      %v3036 = vadd.f32 %v3023, %v3035
      %v3037 = vpop.f32.mrf.mxu0
      %3038 = vdwg.mxu0
      %3039 = vmatpush.bf16.msra.mxu0 %v2319
      %3040 = vmatpush.bf16.msra.mxu0 %v2317
      %3041 = vmatpush.bf16.msra.mxu0 %v2315
      %3042 = vmatpush.bf16.msra.mxu0 %v2313
      %3043 = vmatpush.bf16.msra.mxu0 %v2311
      %3044 = vmatpush.bf16.msra.mxu0 %v2309
      %3045 = vmatpush.bf16.msra.mxu0 %v2307
      %3046 = vmatpush.bf16.msra.mxu0 %v2305
      %3047 = vmatmul.bf16.gmra.mxu0 %v725
      %v3048 = vpop.f32.mrf.mxu0
      %v3049 = vadd.f32 %v3036, %v3048
      %v3050 = vpop.f32.mrf.mxu0
      %3051 = vdwg.mxu0
      %3052 = vmatpush.bf16.msra.mxu0 %v2335
      %3053 = vmatpush.bf16.msra.mxu0 %v2333
      %3054 = vmatpush.bf16.msra.mxu0 %v2331
      %3055 = vmatpush.bf16.msra.mxu0 %v2329
      %3056 = vmatpush.bf16.msra.mxu0 %v2327
      %3057 = vmatpush.bf16.msra.mxu0 %v2325
      %3058 = vmatpush.bf16.msra.mxu0 %v2323
      %3059 = vmatpush.bf16.msra.mxu0 %v2321
      %3060 = vmatmul.bf16.gmra.mxu0 %v726
      %v3061 = vpop.f32.mrf.mxu0
      %v3062 = vadd.f32 %v3049, %v3061
      %v3063 = vpop.f32.mrf.mxu0
      %3064 = vdwg.mxu0
      %3065 = vmatpush.bf16.msra.mxu0 %v2351
      %3066 = vmatpush.bf16.msra.mxu0 %v2349
      %3067 = vmatpush.bf16.msra.mxu0 %v2347
      %3068 = vmatpush.bf16.msra.mxu0 %v2345
      %3069 = vmatpush.bf16.msra.mxu0 %v2343
      %3070 = vmatpush.bf16.msra.mxu0 %v2341
      %3071 = vmatpush.bf16.msra.mxu0 %v2339
      %3072 = vmatpush.bf16.msra.mxu0 %v2337
      %3073 = vmatmul.bf16.gmra.mxu0 %v727
      %v3074 = vpop.f32.mrf.mxu0
      %v3075 = vadd.f32 %v3062, %v3074
      %v3076 = vpop.f32.mrf.mxu0
      %3077 = vdwg.mxu0
      %3078 = vmatpush.bf16.msra.mxu0 %v1968
      %3079 = vmatpush.bf16.msra.mxu0 %v1966
      %3080 = vmatpush.bf16.msra.mxu0 %v1964
      %3081 = vmatpush.bf16.msra.mxu0 %v1962
      %3082 = vmatpush.bf16.msra.mxu0 %v1960
      %3083 = vmatpush.bf16.msra.mxu0 %v1958
      %3084 = vmatpush.bf16.msra.mxu0 %v1956
      %3085 = vmatpush.bf16.msra.mxu0 %v1954
      %3086 = vmatmul.bf16.gmra.mxu0 %v703
      %v3087 = vpop.f32.mrf.mxu0
      %v3088 = vadd.f32 0.0, %v3087
      %v3089 = vpop.f32.mrf.mxu0
      %3090 = vdwg.mxu0
      %3091 = vmatpush.bf16.msra.mxu0 %v1984
      %3092 = vmatpush.bf16.msra.mxu0 %v1982
      %3093 = vmatpush.bf16.msra.mxu0 %v1980
      %3094 = vmatpush.bf16.msra.mxu0 %v1978
      %3095 = vmatpush.bf16.msra.mxu0 %v1976
      %3096 = vmatpush.bf16.msra.mxu0 %v1974
      %3097 = vmatpush.bf16.msra.mxu0 %v1972
      %3098 = vmatpush.bf16.msra.mxu0 %v1970
      %3099 = vmatmul.bf16.gmra.mxu0 %v704
      %v3100 = vpop.f32.mrf.mxu0
      %v3101 = vadd.f32 %v3088, %v3100
      %v3102 = vpop.f32.mrf.mxu0
      %3103 = vdwg.mxu0
      %3104 = vmatpush.bf16.msra.mxu0 %v2000
      %3105 = vmatpush.bf16.msra.mxu0 %v1998
      %3106 = vmatpush.bf16.msra.mxu0 %v1996
      %3107 = vmatpush.bf16.msra.mxu0 %v1994
      %3108 = vmatpush.bf16.msra.mxu0 %v1992
      %3109 = vmatpush.bf16.msra.mxu0 %v1990
      %3110 = vmatpush.bf16.msra.mxu0 %v1988
      %3111 = vmatpush.bf16.msra.mxu0 %v1986
      %3112 = vmatmul.bf16.gmra.mxu0 %v705
      %v3113 = vpop.f32.mrf.mxu0
      %v3114 = vadd.f32 %v3101, %v3113
      %v3115 = vpop.f32.mrf.mxu0
      %3116 = vdwg.mxu0
      %3117 = vmatpush.bf16.msra.mxu0 %v2016
      %3118 = vmatpush.bf16.msra.mxu0 %v2014
      %3119 = vmatpush.bf16.msra.mxu0 %v2012
      %3120 = vmatpush.bf16.msra.mxu0 %v2010
      %3121 = vmatpush.bf16.msra.mxu0 %v2008
      %3122 = vmatpush.bf16.msra.mxu0 %v2006
      %3123 = vmatpush.bf16.msra.mxu0 %v2004
      %3124 = vmatpush.bf16.msra.mxu0 %v2002
      %3125 = vmatmul.bf16.gmra.mxu0 %v706
      %v3126 = vpop.f32.mrf.mxu0
      %v3127 = vadd.f32 %v3114, %v3126
      %v3128 = vpop.f32.mrf.mxu0
      %3129 = vdwg.mxu0
      %3130 = vmatpush.bf16.msra.mxu0 %v2032
      %3131 = vmatpush.bf16.msra.mxu0 %v2030
      %3132 = vmatpush.bf16.msra.mxu0 %v2028
      %3133 = vmatpush.bf16.msra.mxu0 %v2026
      %3134 = vmatpush.bf16.msra.mxu0 %v2024
      %3135 = vmatpush.bf16.msra.mxu0 %v2022
      %3136 = vmatpush.bf16.msra.mxu0 %v2020
      %3137 = vmatpush.bf16.msra.mxu0 %v2018
      %3138 = vmatmul.bf16.gmra.mxu0 %v707
      %v3139 = vpop.f32.mrf.mxu0
      %v3140 = vadd.f32 %v3127, %v3139
      %v3141 = vpop.f32.mrf.mxu0
      %3142 = vdwg.mxu0
      %3143 = vmatpush.bf16.msra.mxu0 %v2048
      %3144 = vmatpush.bf16.msra.mxu0 %v2046
      %3145 = vmatpush.bf16.msra.mxu0 %v2044
      %3146 = vmatpush.bf16.msra.mxu0 %v2042
      %3147 = vmatpush.bf16.msra.mxu0 %v2040
      %3148 = vmatpush.bf16.msra.mxu0 %v2038
      %3149 = vmatpush.bf16.msra.mxu0 %v2036
      %3150 = vmatpush.bf16.msra.mxu0 %v2034
      %3151 = vmatmul.bf16.gmra.mxu0 %v708
      %v3152 = vpop.f32.mrf.mxu0
      %v3153 = vadd.f32 %v3140, %v3152
      %v3154 = vpop.f32.mrf.mxu0
      %3155 = vdwg.mxu0
      %3156 = vmatpush.bf16.msra.mxu0 %v2064
      %3157 = vmatpush.bf16.msra.mxu0 %v2062
      %3158 = vmatpush.bf16.msra.mxu0 %v2060
      %3159 = vmatpush.bf16.msra.mxu0 %v2058
      %3160 = vmatpush.bf16.msra.mxu0 %v2056
      %3161 = vmatpush.bf16.msra.mxu0 %v2054
      %3162 = vmatpush.bf16.msra.mxu0 %v2052
      %3163 = vmatpush.bf16.msra.mxu0 %v2050
      %3164 = vmatmul.bf16.gmra.mxu0 %v709
      %v3165 = vpop.f32.mrf.mxu0
      %v3166 = vadd.f32 %v3153, %v3165
      %v3167 = vpop.f32.mrf.mxu0
      %3168 = vdwg.mxu0
      %3169 = vmatpush.bf16.msra.mxu0 %v2080
      %3170 = vmatpush.bf16.msra.mxu0 %v2078
      %3171 = vmatpush.bf16.msra.mxu0 %v2076
      %3172 = vmatpush.bf16.msra.mxu0 %v2074
      %3173 = vmatpush.bf16.msra.mxu0 %v2072
      %3174 = vmatpush.bf16.msra.mxu0 %v2070
      %3175 = vmatpush.bf16.msra.mxu0 %v2068
      %3176 = vmatpush.bf16.msra.mxu0 %v2066
      %3177 = vmatmul.bf16.gmra.mxu0 %v710
      %v3178 = vpop.f32.mrf.mxu0
      %v3179 = vadd.f32 %v3166, %v3178
      %v3180 = vpop.f32.mrf.mxu0
      %3181 = vdwg.mxu0
      %3182 = vmatpush.bf16.msra.mxu0 %v2096
      %3183 = vmatpush.bf16.msra.mxu0 %v2094
      %3184 = vmatpush.bf16.msra.mxu0 %v2092
      %3185 = vmatpush.bf16.msra.mxu0 %v2090
      %3186 = vmatpush.bf16.msra.mxu0 %v2088
      %3187 = vmatpush.bf16.msra.mxu0 %v2086
      %3188 = vmatpush.bf16.msra.mxu0 %v2084
      %3189 = vmatpush.bf16.msra.mxu0 %v2082
      %3190 = vmatmul.bf16.gmra.mxu0 %v711
      %v3191 = vpop.f32.mrf.mxu0
      %v3192 = vadd.f32 %v3179, %v3191
      %v3193 = vpop.f32.mrf.mxu0
      %3194 = vdwg.mxu0
      %3195 = vmatpush.bf16.msra.mxu0 %v2112
      %3196 = vmatpush.bf16.msra.mxu0 %v2110
      %3197 = vmatpush.bf16.msra.mxu0 %v2108
      %3198 = vmatpush.bf16.msra.mxu0 %v2106
      %3199 = vmatpush.bf16.msra.mxu0 %v2104
      %3200 = vmatpush.bf16.msra.mxu0 %v2102
      %3201 = vmatpush.bf16.msra.mxu0 %v2100
      %3202 = vmatpush.bf16.msra.mxu0 %v2098
      %3203 = vmatmul.bf16.gmra.mxu0 %v712
      %v3204 = vpop.f32.mrf.mxu0
      %v3205 = vadd.f32 %v3192, %v3204
      %v3206 = vpop.f32.mrf.mxu0
      %3207 = vdwg.mxu0
      %3208 = vmatpush.bf16.msra.mxu0 %v2128
      %3209 = vmatpush.bf16.msra.mxu0 %v2126
      %3210 = vmatpush.bf16.msra.mxu0 %v2124
      %3211 = vmatpush.bf16.msra.mxu0 %v2122
      %3212 = vmatpush.bf16.msra.mxu0 %v2120
      %3213 = vmatpush.bf16.msra.mxu0 %v2118
      %3214 = vmatpush.bf16.msra.mxu0 %v2116
      %3215 = vmatpush.bf16.msra.mxu0 %v2114
      %3216 = vmatmul.bf16.gmra.mxu0 %v713
      %v3217 = vpop.f32.mrf.mxu0
      %v3218 = vadd.f32 %v3205, %v3217
      %v3219 = vpop.f32.mrf.mxu0
      %3220 = vdwg.mxu0
      %3221 = vmatpush.bf16.msra.mxu0 %v2144
      %3222 = vmatpush.bf16.msra.mxu0 %v2142
      %3223 = vmatpush.bf16.msra.mxu0 %v2140
      %3224 = vmatpush.bf16.msra.mxu0 %v2138
      %3225 = vmatpush.bf16.msra.mxu0 %v2136
      %3226 = vmatpush.bf16.msra.mxu0 %v2134
      %3227 = vmatpush.bf16.msra.mxu0 %v2132
      %3228 = vmatpush.bf16.msra.mxu0 %v2130
      %3229 = vmatmul.bf16.gmra.mxu0 %v714
      %v3230 = vpop.f32.mrf.mxu0
      %v3231 = vadd.f32 %v3218, %v3230
      %v3232 = vpop.f32.mrf.mxu0
      %3233 = vdwg.mxu0
      %3234 = vmatpush.bf16.msra.mxu0 %v2160
      %3235 = vmatpush.bf16.msra.mxu0 %v2158
      %3236 = vmatpush.bf16.msra.mxu0 %v2156
      %3237 = vmatpush.bf16.msra.mxu0 %v2154
      %3238 = vmatpush.bf16.msra.mxu0 %v2152
      %3239 = vmatpush.bf16.msra.mxu0 %v2150
      %3240 = vmatpush.bf16.msra.mxu0 %v2148
      %3241 = vmatpush.bf16.msra.mxu0 %v2146
      %3242 = vmatmul.bf16.gmra.mxu0 %v715
      %v3243 = vpop.f32.mrf.mxu0
      %v3244 = vadd.f32 %v3231, %v3243
      %v3245 = vpop.f32.mrf.mxu0
      %3246 = vdwg.mxu0
      %3247 = vmatpush.bf16.msra.mxu0 %v2176
      %3248 = vmatpush.bf16.msra.mxu0 %v2174
      %3249 = vmatpush.bf16.msra.mxu0 %v2172
      %3250 = vmatpush.bf16.msra.mxu0 %v2170
      %3251 = vmatpush.bf16.msra.mxu0 %v2168
      %3252 = vmatpush.bf16.msra.mxu0 %v2166
      %3253 = vmatpush.bf16.msra.mxu0 %v2164
      %3254 = vmatpush.bf16.msra.mxu0 %v2162
      %3255 = vmatmul.bf16.gmra.mxu0 %v716
      %v3256 = vpop.f32.mrf.mxu0
      %v3257 = vadd.f32 %v3244, %v3256
      %v3258 = vpop.f32.mrf.mxu0
      %3259 = vdwg.mxu0
      %3260 = vmatpush.bf16.msra.mxu0 %v2192
      %3261 = vmatpush.bf16.msra.mxu0 %v2190
      %3262 = vmatpush.bf16.msra.mxu0 %v2188
      %3263 = vmatpush.bf16.msra.mxu0 %v2186
      %3264 = vmatpush.bf16.msra.mxu0 %v2184
      %3265 = vmatpush.bf16.msra.mxu0 %v2182
      %3266 = vmatpush.bf16.msra.mxu0 %v2180
      %3267 = vmatpush.bf16.msra.mxu0 %v2178
      %3268 = vmatmul.bf16.gmra.mxu0 %v717
      %v3269 = vpop.f32.mrf.mxu0
      %v3270 = vadd.f32 %v3257, %v3269
      %v3271 = vpop.f32.mrf.mxu0
      %3272 = vdwg.mxu0
      %3273 = vmatpush.bf16.msra.mxu0 %v2208
      %3274 = vmatpush.bf16.msra.mxu0 %v2206
      %3275 = vmatpush.bf16.msra.mxu0 %v2204
      %3276 = vmatpush.bf16.msra.mxu0 %v2202
      %3277 = vmatpush.bf16.msra.mxu0 %v2200
      %3278 = vmatpush.bf16.msra.mxu0 %v2198
      %3279 = vmatpush.bf16.msra.mxu0 %v2196
      %3280 = vmatpush.bf16.msra.mxu0 %v2194
      %3281 = vmatmul.bf16.gmra.mxu0 %v718
      %v3282 = vpop.f32.mrf.mxu0
      %v3283 = vadd.f32 %v3270, %v3282
      %v3284 = vpop.f32.mrf.mxu0
      %3285 = vdwg.mxu0
      %3286 = vmatpush.bf16.msra.mxu0 %v2224
      %3287 = vmatpush.bf16.msra.mxu0 %v2222
      %3288 = vmatpush.bf16.msra.mxu0 %v2220
      %3289 = vmatpush.bf16.msra.mxu0 %v2218
      %3290 = vmatpush.bf16.msra.mxu0 %v2216
      %3291 = vmatpush.bf16.msra.mxu0 %v2214
      %3292 = vmatpush.bf16.msra.mxu0 %v2212
      %3293 = vmatpush.bf16.msra.mxu0 %v2210
      %3294 = vmatmul.bf16.gmra.mxu0 %v719
      %v3295 = vpop.f32.mrf.mxu0
      %v3296 = vadd.f32 %v3283, %v3295
      %v3297 = vpop.f32.mrf.mxu0
      %3298 = vdwg.mxu0
      %3299 = vmatpush.bf16.msra.mxu0 %v2240
      %3300 = vmatpush.bf16.msra.mxu0 %v2238
      %3301 = vmatpush.bf16.msra.mxu0 %v2236
      %3302 = vmatpush.bf16.msra.mxu0 %v2234
      %3303 = vmatpush.bf16.msra.mxu0 %v2232
      %3304 = vmatpush.bf16.msra.mxu0 %v2230
      %3305 = vmatpush.bf16.msra.mxu0 %v2228
      %3306 = vmatpush.bf16.msra.mxu0 %v2226
      %3307 = vmatmul.bf16.gmra.mxu0 %v720
      %v3308 = vpop.f32.mrf.mxu0
      %v3309 = vadd.f32 %v3296, %v3308
      %v3310 = vpop.f32.mrf.mxu0
      %3311 = vdwg.mxu0
      %3312 = vmatpush.bf16.msra.mxu0 %v2256
      %3313 = vmatpush.bf16.msra.mxu0 %v2254
      %3314 = vmatpush.bf16.msra.mxu0 %v2252
      %3315 = vmatpush.bf16.msra.mxu0 %v2250
      %3316 = vmatpush.bf16.msra.mxu0 %v2248
      %3317 = vmatpush.bf16.msra.mxu0 %v2246
      %3318 = vmatpush.bf16.msra.mxu0 %v2244
      %3319 = vmatpush.bf16.msra.mxu0 %v2242
      %3320 = vmatmul.bf16.gmra.mxu0 %v721
      %v3321 = vpop.f32.mrf.mxu0
      %v3322 = vadd.f32 %v3309, %v3321
      %v3323 = vpop.f32.mrf.mxu0
      %3324 = vdwg.mxu0
      %3325 = vmatpush.bf16.msra.mxu0 %v2272
      %3326 = vmatpush.bf16.msra.mxu0 %v2270
      %3327 = vmatpush.bf16.msra.mxu0 %v2268
      %3328 = vmatpush.bf16.msra.mxu0 %v2266
      %3329 = vmatpush.bf16.msra.mxu0 %v2264
      %3330 = vmatpush.bf16.msra.mxu0 %v2262
      %3331 = vmatpush.bf16.msra.mxu0 %v2260
      %3332 = vmatpush.bf16.msra.mxu0 %v2258
      %3333 = vmatmul.bf16.gmra.mxu0 %v722
      %v3334 = vpop.f32.mrf.mxu0
      %v3335 = vadd.f32 %v3322, %v3334
      %v3336 = vpop.f32.mrf.mxu0
      %3337 = vdwg.mxu0
      %3338 = vmatpush.bf16.msra.mxu0 %v2288
      %3339 = vmatpush.bf16.msra.mxu0 %v2286
      %3340 = vmatpush.bf16.msra.mxu0 %v2284
      %3341 = vmatpush.bf16.msra.mxu0 %v2282
      %3342 = vmatpush.bf16.msra.mxu0 %v2280
      %3343 = vmatpush.bf16.msra.mxu0 %v2278
      %3344 = vmatpush.bf16.msra.mxu0 %v2276
      %3345 = vmatpush.bf16.msra.mxu0 %v2274
      %3346 = vmatmul.bf16.gmra.mxu0 %v723
      %v3347 = vpop.f32.mrf.mxu0
      %v3348 = vadd.f32 %v3335, %v3347
      %v3349 = vpop.f32.mrf.mxu0
      %3350 = vdwg.mxu0
      %3351 = vmatpush.bf16.msra.mxu0 %v2304
      %3352 = vmatpush.bf16.msra.mxu0 %v2302
      %3353 = vmatpush.bf16.msra.mxu0 %v2300
      %3354 = vmatpush.bf16.msra.mxu0 %v2298
      %3355 = vmatpush.bf16.msra.mxu0 %v2296
      %3356 = vmatpush.bf16.msra.mxu0 %v2294
      %3357 = vmatpush.bf16.msra.mxu0 %v2292
      %3358 = vmatpush.bf16.msra.mxu0 %v2290
      %3359 = vmatmul.bf16.gmra.mxu0 %v724
      %v3360 = vpop.f32.mrf.mxu0
      %v3361 = vadd.f32 %v3348, %v3360
      %v3362 = vpop.f32.mrf.mxu0
      %3363 = vdwg.mxu0
      %3364 = vmatpush.bf16.msra.mxu0 %v2320
      %3365 = vmatpush.bf16.msra.mxu0 %v2318
      %3366 = vmatpush.bf16.msra.mxu0 %v2316
      %3367 = vmatpush.bf16.msra.mxu0 %v2314
      %3368 = vmatpush.bf16.msra.mxu0 %v2312
      %3369 = vmatpush.bf16.msra.mxu0 %v2310
      %3370 = vmatpush.bf16.msra.mxu0 %v2308
      %3371 = vmatpush.bf16.msra.mxu0 %v2306
      %3372 = vmatmul.bf16.gmra.mxu0 %v725
      %v3373 = vpop.f32.mrf.mxu0
      %v3374 = vadd.f32 %v3361, %v3373
      %v3375 = vpop.f32.mrf.mxu0
      %3376 = vdwg.mxu0
      %3377 = vmatpush.bf16.msra.mxu0 %v2336
      %3378 = vmatpush.bf16.msra.mxu0 %v2334
      %3379 = vmatpush.bf16.msra.mxu0 %v2332
      %3380 = vmatpush.bf16.msra.mxu0 %v2330
      %3381 = vmatpush.bf16.msra.mxu0 %v2328
      %3382 = vmatpush.bf16.msra.mxu0 %v2326
      %3383 = vmatpush.bf16.msra.mxu0 %v2324
      %3384 = vmatpush.bf16.msra.mxu0 %v2322
      %3385 = vmatmul.bf16.gmra.mxu0 %v726
      %v3386 = vpop.f32.mrf.mxu0
      %v3387 = vadd.f32 %v3374, %v3386
      %v3388 = vpop.f32.mrf.mxu0
      %3389 = vdwg.mxu0
      %3390 = vmatpush.bf16.msra.mxu0 %v2352
      %3391 = vmatpush.bf16.msra.mxu0 %v2350
      %3392 = vmatpush.bf16.msra.mxu0 %v2348
      %3393 = vmatpush.bf16.msra.mxu0 %v2346
      %3394 = vmatpush.bf16.msra.mxu0 %v2344
      %3395 = vmatpush.bf16.msra.mxu0 %v2342
      %3396 = vmatpush.bf16.msra.mxu0 %v2340
      %3397 = vmatpush.bf16.msra.mxu0 %v2338
      %3398 = vmatmul.bf16.gmra.mxu0 %v727
      %v3399 = vpop.f32.mrf.mxu0
      %v3400 = vadd.f32 %v3387, %v3399
      %v3401 = vpop.f32.mrf.mxu0
      %3402 = vdwg.mxu0
      %v3403 = vadd.f32 %v250, %v3075
      %v3404 = vadd.f32 %v251, %v3400
      %3405 = vst [vmem:[#allocation2] sm:$0xff] %v3403
      %vm3406 = vcmask 588800
      %3407 = vst.msk [vmem:[#allocation2 + $0x8] sm:$0xff] %vm3406, %v3404
      %p3408 = scmp.eq.s32.totalorder %s16, 1
      // Predicated region
      $region45: #{tpu_custom_call.1} parent=39 // pred_check
        %p3409 = pneg %p3408
      $region46: #{tpu_custom_call.1} parent=39 // pred_check_branch
        %3411 = sbr.rel (%p3409) target = $region48
      $region47: #{tpu_custom_call.1} parent=39 // pred_region
        %v3412 = vld [vmem:[#allocation2] sm:$0xff]
        %v3413 = vld [vmem:[#allocation2 + $0x8] sm:$0xff]
        %v3414 = vmax.f32 %v3412, 0.0
        %v3415 = vmax.f32 %v3413, 0.0
        %v3416 = vld [vmem:[%s3] sm:$0xff]
        %v3417 = vld [vmem:[%s3 + $0x8] sm:$0xff]
        %v3418 = vld [vmem:[%s3 + $0x10] sm:$0xff]
        %v3419 = vld [vmem:[%s3 + $0x18] sm:$0xff]
        %v3420 = vld [vmem:[%s3 + $0x20] sm:$0xff]
        %v3421 = vld [vmem:[%s3 + $0x28] sm:$0xff]
        %v3422 = vld [vmem:[%s3 + $0x30] sm:$0xff]
        %v3423 = vld [vmem:[%s3 + $0x38] sm:$0xff]
        %v3424 = vld [vmem:[%s3 + $0x40] sm:$0xff]
        %v3425 = vld [vmem:[%s3 + $0x48] sm:$0xff]
        %v3426 = vld [vmem:[%s3 + $0x50] sm:$0xff]
        %v3427 = vld [vmem:[%s3 + $0x58] sm:$0xff]
        %v3428 = vld [vmem:[%s3 + $0x60] sm:$0xff]
        %v3429 = vld [vmem:[%s3 + $0x68] sm:$0xff]
        %v3430 = vld [vmem:[%s3 + $0x70] sm:$0xff]
        %v3431 = vld [vmem:[%s3 + $0x78] sm:$0xff]
        %v3432 = vld [vmem:[%s3 + $0x80] sm:$0xff]
        %v3433 = vld [vmem:[%s3 + $0x88] sm:$0xff]
        %v3434 = vld [vmem:[%s3 + $0x90] sm:$0xff]
        %v3435 = vld [vmem:[%s3 + $0x98] sm:$0xff]
        %v3436 = vld [vmem:[%s3 + $0xa0] sm:$0xff]
        %v3437 = vld [vmem:[%s3 + $0xa8] sm:$0xff]
        %v3438 = vld [vmem:[%s3 + $0xb0] sm:$0xff]
        %v3439 = vld [vmem:[%s3 + $0xb8] sm:$0xff]
        %v3440 = vld [vmem:[%s3 + $0xc0] sm:$0xff]
        %v3441 = vld [vmem:[%s4] sm:$0x1]
        %v3443 = vperm.slane %v3441, 0
        %v3446 = vsel %vm3406, %v3415, 0
        %3448 = vmatpush.msra.mxu0 %v3431
        %3449 = vmatpush.msra.mxu0 %v3430
        %3450 = vmatpush.msra.mxu0 %v3429
        %3451 = vmatpush.msra.mxu0 %v3428
        %3452 = vmatpush.msra.mxu0 %v3427
        %3453 = vmatpush.msra.mxu0 %v3426
        %3454 = vmatpush.msra.mxu0 %v3425
        %3455 = vmatpush.msra.mxu0 %v3424
        %3456 = vmatpush.msra.mxu0 %v3423
        %3457 = vmatpush.msra.mxu0 %v3422
        %3458 = vmatpush.msra.mxu0 %v3421
        %3459 = vmatpush.msra.mxu0 %v3420
        %3460 = vmatpush.msra.mxu0 %v3419
        %3461 = vmatpush.msra.mxu0 %v3418
        %3462 = vmatpush.msra.mxu0 %v3417
        %3463 = vmatpush.msra.mxu0 %v3416
        %3464 = vmatmul.f32.gmra.mxu0 %v3414
        %v3465 = vpop.f32.mrf.mxu0
        %v3466 = vadd.f32 %v3443, %v3465
        %3467 = vdwg.mxu0
        %3468 = vmatpush.msra.mxu0 0.0
        %3469 = vmatpush.msra.mxu0 0.0
        %3470 = vmatpush.msra.mxu0 0.0
        %3471 = vmatpush.msra.mxu0 0.0
        %3472 = vmatpush.msra.mxu0 0.0
        %3473 = vmatpush.msra.mxu0 0.0
        %3474 = vmatpush.msra.mxu0 0.0
        %3475 = vmatpush.msra.mxu0 %v3440
        %3476 = vmatpush.msra.mxu0 %v3439
        %3477 = vmatpush.msra.mxu0 %v3438
        %3478 = vmatpush.msra.mxu0 %v3437
        %3479 = vmatpush.msra.mxu0 %v3436
        %3480 = vmatpush.msra.mxu0 %v3435
        %3481 = vmatpush.msra.mxu0 %v3434
        %3482 = vmatpush.msra.mxu0 %v3433
        %3483 = vmatpush.msra.mxu0 %v3432
        %3484 = vmatmul.f32.gmra.mxu0 %v3446
        %v3485 = vpop.f32.mrf.mxu0
        %v3486 = vadd.f32 %v3466, %v3485
        %3487 = vdwg.mxu0
        %vm3488 = vcmask 15360
        %v3489 = vsel %vm3488, %v3486, -inf
        %3490 = vmax.xlane.f32.xlu0 %v3489
        %v3491 = vpop.xlane.xlu0 %3490
        %v3492 = vsub.f32 %v3486, %v3491
        %v3493 = vmul.f32 %v3492, 1.442695
        %v3494 = vpow.pop %v3493
        %v3495 = vsel %vm3488, %v3494, 0.0
        %3496 = vadd.xlane.f32.xlu0 %v3495
        %v3497 = vpop.xlane.xlu0 %3496
        %v3498 = vrcp.pop %v3497
        %v3499 = vmul.f32 %v3497, %v3498
        %v3500 = vsub.f32 1.0, %v3499
        %v3501 = vmul.f32 %v3498, %v3500
        %v3502 = vadd.f32 %v3498, %v3501
        %vm3503 = vweird.f32 %v3497
        %vm3504 = vweird.f32 %v3498
        %vm3505 = vmor %vm3503, %vm3504
        %v3506 = vsel %vm3505, %v3498, %v3502
        %v3507 = vand.u32 2147483647, %v3497
        %vm3508 = vcmp.eq.f32.partialorder %v3507, 8.507059e+37
        %v3509 = vand.u32 %v3497, 2147483648
        %v3510 = vor.u32 1.1754944e-38, %v3509
        %v3511 = vsel %vm3508, %v3510, %v3506
        %v3512 = vmul.f32 %v3494, %v3511
        %3513 = vst.msk [vmem:[%s5] sm:$0xff] %vm3488, %v3512
      $region48: #{tpu_custom_call.1} parent=39 // pred_fallthru
        _
      // Predicated region
      $region49: #{tpu_custom_call.1} parent=39 // pred_check
        %p3514 = pneg %p144
      $region50: #{tpu_custom_call.1} parent=39 // pred_check_branch
        %3516 = sbr.rel (%p3514) target = $region52
      $region51: #{tpu_custom_call.1} parent=39 // pred_region
        _
      $region52: #{tpu_custom_call.1} parent=39 // pred_fallthru
        _
      // Predicated region
      $region53: #{tpu_custom_call.1} parent=39 // pred_check
        %p3517 = pneg %p144
      $region54: #{tpu_custom_call.1} parent=39 // pred_check_branch
        %3519 = sbr.rel (%p3517) target = $region56
      $region55: #{tpu_custom_call.1} parent=39 // pred_region
        _
      $region56: #{tpu_custom_call.1} parent=39 // pred_fallthru
        _
    $region40: #{tpu_custom_call.1} parent=5 // pred_fallthru
      _
    %p3520 = scmp.le.s32.totalorder 2, %s11
    // Predicated region
    $region57: #{tpu_custom_call.1} parent=5 // pred_check
      %p3521 = pneg %p3520
    $region58: #{tpu_custom_call.1} parent=5 // pred_check_branch
      %3523 = sbr.rel (%p3521) target = $region60
    $region59: #{tpu_custom_call.1} parent=5 // pred_region
      %s3524 = ssub.s32 %s11, 2
    $region60: #{tpu_custom_call.1} parent=5 // pred_fallthru
      _
  $region6: #{tpu_custom_call.1} parent=0 // loop_footer
    %s15 = sadd.s32 1, %s11
  $region7: #{tpu_custom_call.1} parent=0 // loop_footer_branch
    %10 = sbr.rel target = $region3
  $region8: #{tpu_custom_call.1} parent=0 // loop_exit
    _

</llo_original>
